<compile_context>
chip_gen: v7x
topology: tpu7x:2x2x1
jax: 0.10.0
libtpu: 0.0.40
codegen_flags: <defaults>
</compile_context>

<pallas_src>
import functools

import jax
import jax.numpy as jnp
from jax import lax
from jax.experimental import pallas as pl
from jax.experimental.pallas import tpu as pltpu


def _round_up(v, m):
    return ((v + m - 1) // m) * m


def _reorder_gates(w, H):
    """PyTorch gate order [i, f, g, o] -> [i, f, o, g] on the last (4H) axis."""
    return jnp.concatenate(
        [w[..., :2 * H], w[..., 3 * H:], w[..., 2 * H:3 * H]], axis=-1)


# ----------------------------------------------------------------------------
# Fused kernel: all LSTM layers + Linear + running cumsum for one time chunk.
# ----------------------------------------------------------------------------
def _fused_kernel(x_ref, wih0_ref, wihr_ref, whh_ref, b_ref, wfc_ref, bfc_ref,
                  out_ref, seq_sc, gx_sc, h_sc, c_sc, cum_sc, *, unroll):
    T_C, N, D_in = x_ref.shape
    n_layers, H, H4 = whh_ref.shape
    OUT = out_ref.shape[-1]
    t_chunk = pl.program_id(1)

    # Start of a (batch-block's) sequence: zero-init recurrent + cumsum state.
    @pl.when(t_chunk == 0)
    def _():
        h_sc[...] = jnp.zeros_like(h_sc)
        c_sc[...] = jnp.zeros_like(c_sc)
        cum_sc[...] = jnp.zeros_like(cum_sc)

    def run_layer(l, inp_flat_bf16, w_ih):
        # Hoisted input projection for the whole chunk: one wide bf16 MXU
        # matmul (f32 accumulate) with the bias folded in, so the serial time
        # loop only does the unavoidable h @ W_hh.
        gx = jnp.dot(inp_flat_bf16, w_ih,
                     preferred_element_type=jnp.float32) + b_ref[l]
        gx_sc[...] = gx.reshape(T_C, N, H4)

        w_hh = whh_ref[l]

        def step(t, carry):
            h, c = carry                                   # f32 carries
            gates = gx_sc[t] + jnp.dot(h.astype(jnp.bfloat16), w_hh,
                                       preferred_element_type=jnp.float32)
            # Gate order [i, f, o, g]: one contiguous sigmoid + one tanh.
            ifo = jax.nn.sigmoid(gates[:, :3 * H])
            g = jnp.tanh(gates[:, 3 * H:])
            c = ifo[:, H:2 * H] * c + ifo[:, :H] * g
            h = ifo[:, 2 * H:3 * H] * jnp.tanh(c)
            seq_sc[t] = h          # hidden chunk stays resident in VMEM (f32)
            return (h, c)

        h_f, c_f = lax.fori_loop(0, T_C, step, (h_sc[l], c_sc[l]),
                                 unroll=unroll)
        h_sc[l] = h_f              # carry across time chunks
        c_sc[l] = c_f

    # Layer 0 consumes the raw input chunk; deeper layers consume the previous
    # layer's hidden chunk from VMEM (no HBM round-trip between layers).
    run_layer(0, x_ref[...].reshape(T_C * N, D_in).astype(jnp.bfloat16),
              wih0_ref[...])
    for l in range(1, n_layers):
        run_layer(l, seq_sc[...].reshape(T_C * N, H).astype(jnp.bfloat16),
                  wihr_ref[l - 1])

    # Final FC on the chunk (single MXU matmul) with the running cumsum fused
    # into the store path: one write per timestep, no second RMW pass.
    y = (jnp.dot(seq_sc[...].reshape(T_C * N, H).astype(jnp.bfloat16),
                 wfc_ref[...], preferred_element_type=jnp.float32)
         + bfc_ref[...])
    y = y.reshape(T_C, N, OUT)

    acc = cum_sc[...]
    for t in range(T_C):           # static: T_C is the (small) chunk size
        acc = acc + y[t]
        out_ref[t] = acc
    cum_sc[...] = acc


# ----------------------------------------------------------------------------
# Model wrapper (batch-first interface, like the PyTorch module).
# ----------------------------------------------------------------------------
def mymodel_forward(x, params, *, t_chunk=32):
    """x: (N, L, in_dim) batch-first. Returns y: (N, L, out_dim)."""
    N0, L, D_in = x.shape
    n_layers = len(params["lstm"])
    H = params["lstm"][0][1].shape[0]
    out_dim = params["fc_w"].shape[1]
    OUT = out_dim      # tiny out_dim: full-dim (masked) stores beat 32x padding

    T_C = min(t_chunk, L)
    L_pad = _round_up(L, T_C)
    N_pad = _round_up(N0, 8)
    # v7x megacore: split the batch over the two TensorCores when possible.
    n_b_blocks = 2 if (N_pad >= 16 and N_pad % 16 == 0) else 1
    N_B = N_pad // n_b_blocks

    x_tm = jnp.transpose(x, (1, 0, 2)).astype(jnp.float32)      # (L, N0, D)
    x_tm = jnp.pad(x_tm, ((0, L_pad - L), (0, N_pad - N0), (0, 0)))

    # Gate reorder [i,f,g,o] -> [i,f,o,g]; matmul weights stored in bf16.
    prep = lambda w: _reorder_gates(w, H)
    w_ih0 = prep(params["lstm"][0][0]).astype(jnp.bfloat16)      # (D_in, 4H)
    if n_layers > 1:
        w_ih_rest = jnp.stack(
            [prep(params["lstm"][l][0]) for l in range(1, n_layers)]
        ).astype(jnp.bfloat16)
    else:
        # TODO(synk): dead (1, H, 4H) dummy DMA when n_layers == 1; harmless.
        w_ih_rest = jnp.zeros((1, H, 4 * H), jnp.bfloat16)
    w_hh = jnp.stack([prep(p[1]) for p in params["lstm"]]).astype(jnp.bfloat16)
    b = jnp.stack([prep(p[2]) for p in params["lstm"]]).astype(jnp.float32)
    w_fc = params["fc_w"].astype(jnp.bfloat16)
    b_fc = params["fc_b"].astype(jnp.float32)

    # Explicit scoped-VMEM budget from the real footprint (x2 in/out buffers).
    elt = lambda a: a.size * a.dtype.itemsize
    footprint = (2 * (T_C * N_B * D_in * 4 + T_C * N_B * OUT * 4)
                 + 2 * (elt(w_ih0) + elt(w_ih_rest) + elt(w_hh) + elt(b)
                        + elt(w_fc) + elt(b_fc))
                 + T_C * N_B * H * 4 + T_C * N_B * 4 * H * 4
                 + 2 * n_layers * N_B * H * 4 + N_B * OUT * 4)
    vmem_limit = int(min(max(2 * footprint + (2 << 20), 16 << 20), 48 << 20))

    kernel = functools.partial(_fused_kernel, unroll=min(T_C, 8))

    y_tm = pl.pallas_call(
        kernel,
        out_shape=jax.ShapeDtypeStruct((L_pad, N_pad, OUT), jnp.float32),
        grid_spec=pltpu.PrefetchScalarGridSpec(
            num_scalar_prefetch=0,
            grid=(n_b_blocks, L_pad // T_C),
            in_specs=[
                pl.BlockSpec((T_C, N_B, D_in), lambda bi, ti: (ti, bi, 0)),
                pl.BlockSpec(w_ih0.shape, lambda bi, ti: (0, 0)),
                pl.BlockSpec(w_ih_rest.shape, lambda bi, ti: (0, 0, 0)),
                pl.BlockSpec(w_hh.shape, lambda bi, ti: (0, 0, 0)),
                pl.BlockSpec(b.shape, lambda bi, ti: (0, 0, 0)),
                pl.BlockSpec(w_fc.shape, lambda bi, ti: (0, 0)),
                pl.BlockSpec(b_fc.shape, lambda bi, ti: (0, 0)),
            ],
            out_specs=pl.BlockSpec((T_C, N_B, OUT), lambda bi, ti: (ti, bi, 0)),
            scratch_shapes=[
                pltpu.VMEM((T_C, N_B, H), jnp.float32),       # hidden chunk
                pltpu.VMEM((T_C, N_B, 4 * H), jnp.float32),   # gate pre-acts
                pltpu.VMEM((n_layers, N_B, H), jnp.float32),  # h carry
                pltpu.VMEM((n_layers, N_B, H), jnp.float32),  # c carry
                pltpu.VMEM((N_B, OUT), jnp.float32),          # cumsum carry
            ],
        ),
        compiler_params=pltpu.CompilerParams(
            dimension_semantics=("parallel", "arbitrary"),
            vmem_limit_bytes=vmem_limit),
    )(x_tm, w_ih0, w_ih_rest, w_hh, b, w_fc, b_fc)

    # Slice padding off BEFORE the transpose.
    return jnp.transpose(y_tm[:L, :N0, :out_dim], (1, 0, 2))


# ----------------------------------------------------------------------------
# Deterministic parameter init (PyTorch-style uniform(-1/sqrt(H), 1/sqrt(H))),
# stored pre-transposed as (D, 4H) / (H, 4H) with gate order [i, f, g, o].
# ----------------------------------------------------------------------------
def init_params(key, in_dim, n_units, n_layers, out_dim):
    H = n_units
    bound = 1.0 / jnp.sqrt(jnp.float32(H))
    params = {"lstm": []}
    for layer in range(n_layers):
        d_in = in_dim if layer == 0 else n_units
        key, k1, k2, k3, k4 = jax.random.split(key, 5)
        w_ih = jax.random.uniform(k1, (d_in, 4 * H), jnp.float32, -bound, bound)
        w_hh = jax.random.uniform(k2, (H, 4 * H), jnp.float32, -bound, bound)
        b_ih = jax.random.uniform(k3, (1, 4 * H), jnp.float32, -bound, bound)
        b_hh = jax.random.uniform(k4, (1, 4 * H), jnp.float32, -bound, bound)
        params["lstm"].append((w_ih, w_hh, b_ih + b_hh))
    key, k5, k6 = jax.random.split(key, 3)
    params["fc_w"] = jax.random.uniform(k5, (H, out_dim), jnp.float32,
                                        -bound, bound)
    params["fc_b"] = jax.random.uniform(k6, (1, out_dim), jnp.float32,
                                        -bound, bound)
    return params


# ----------------------------------------------------------------------------
# Pure-JAX reference (lax.scan).  With match_bf16=True it applies the same
# bf16-operand / f32-accumulate matmul policy as the kernel so the comparison
# is apples-to-apples (gates/cell/cumsum stay f32 in both).
# ----------------------------------------------------------------------------
def reference_forward(x, params, *, match_bf16=True):
    cast = (lambda a: a.astype(jnp.bfloat16)) if match_bf16 else (lambda a: a)
    x_tm = jnp.transpose(x, (1, 0, 2))
    seq = x_tm
    N = x.shape[0]
    for (w_ih, w_hh, bias) in params["lstm"]:
        H = w_hh.shape[0]
        w_ih_c, w_hh_c = cast(w_ih), cast(w_hh)

        def step(carry, x_t, w_ih_c=w_ih_c, w_hh_c=w_hh_c, bias=bias, H=H):
            h, c = carry
            gates = (jnp.dot(cast(x_t), w_ih_c,
                             preferred_element_type=jnp.float32)
                     + jnp.dot(cast(h), w_hh_c,
                               preferred_element_type=jnp.float32)
                     + bias[0])
            i = jax.nn.sigmoid(gates[:, :H])
            f = jax.nn.sigmoid(gates[:, H:2 * H])
            g = jnp.tanh(gates[:, 2 * H:3 * H])
            o = jax.nn.sigmoid(gates[:, 3 * H:])
            c = f * c + i * g
            h = o * jnp.tanh(c)
            return (h, c), h

        init = (jnp.zeros((N, H), jnp.float32), jnp.zeros((N, H), jnp.float32))
        _, seq = lax.scan(step, init, seq)
    y_tm = (jnp.dot(cast(seq), cast(params["fc_w"]),
                    preferred_element_type=jnp.float32) + params["fc_b"][0])
    y_tm = jnp.cumsum(y_tm, axis=0)
    return jnp.transpose(y_tm, (1, 0, 2))


if __name__ == "__main__":
    N, L = 2, 8
    in_dim, n_units, n_layers, out_dim = 4, 32, 2, 4

    key = jax.random.PRNGKey(0)
    key_p, key_x = jax.random.split(key)
    params = init_params(key_p, in_dim, n_units, n_layers, out_dim)
    x = jax.random.normal(key_x, (N, L, in_dim), jnp.float32)

    # t_chunk=4 so the 8-step sequence spans 2 time chunks and exercises the
    # persistent h/c + cumsum carries across grid steps.
    forward = jax.jit(functools.partial(mymodel_forward, t_chunk=4))
    y = jax.block_until_ready(forward(x, params))
    assert y.shape == (N, L, out_dim), y.shape

    y_ref = jax.block_until_ready(reference_forward(x, params))
    assert jnp.allclose(y, y_ref, atol=2e-3, rtol=2e-3), float(
        jnp.max(jnp.abs(y - y_ref)))

    print("KERNEL_OK")
</pallas_src>

<mosaic_0001>
module attributes {stable_mosaic.version = 11 : i64} {
  func.func @_fused_kernel(%arg0: i32, %arg1: i32, %arg2: memref<4x8x4xf32, #tpu.memory_space<vmem>>, %arg3: memref<4x128xbf16, #tpu.memory_space<vmem>>, %arg4: memref<1x32x128xbf16, #tpu.memory_space<vmem>>, %arg5: memref<2x32x128xbf16, #tpu.memory_space<vmem>>, %arg6: memref<2x1x128xf32, #tpu.memory_space<vmem>>, %arg7: memref<32x4xbf16, #tpu.memory_space<vmem>>, %arg8: memref<1x4xf32, #tpu.memory_space<vmem>>, %arg9: memref<4x8x4xf32, #tpu.memory_space<vmem>>, %arg10: memref<4x8x32xf32, #tpu.memory_space<vmem>>, %arg11: memref<4x8x128xf32, #tpu.memory_space<vmem>>, %arg12: memref<2x8x32xf32, #tpu.memory_space<vmem>>, %arg13: memref<2x8x32xf32, #tpu.memory_space<vmem>>, %arg14: memref<8x4xf32, #tpu.memory_space<vmem>>) attributes {dimension_semantics = [#tpu.dimension_semantics<parallel>, #tpu.dimension_semantics<arbitrary>], iteration_bounds = array<i64: 1, 2>, scalar_prefetch = 0 : i64, scratch_operands = 5 : i64, tpu.core_type = #tpu.core_type<tc>, window_params = [{transform_indices = @transform_0, window_bounds = array<i64: 4, 8, 4>}, {pipeline_mode = #tpu.pipeline_mode<synchronous>, transform_indices = @transform_1, window_bounds = array<i64: 4, 128>}, {pipeline_mode = #tpu.pipeline_mode<synchronous>, transform_indices = @transform_2, window_bounds = array<i64: 1, 32, 128>}, {pipeline_mode = #tpu.pipeline_mode<synchronous>, transform_indices = @transform_3, window_bounds = array<i64: 2, 32, 128>}, {pipeline_mode = #tpu.pipeline_mode<synchronous>, transform_indices = @transform_4, window_bounds = array<i64: 2, 1, 128>}, {pipeline_mode = #tpu.pipeline_mode<synchronous>, transform_indices = @transform_5, window_bounds = array<i64: 32, 4>}, {pipeline_mode = #tpu.pipeline_mode<synchronous>, transform_indices = @transform_6, window_bounds = array<i64: 1, 4>}, {transform_indices = @transform_7, window_bounds = array<i64: 4, 8, 4>}]} {
    %c0_i32 = arith.constant 0 : i32
    %0 = arith.cmpi eq, %arg1, %c0_i32 : i32
    %1 = arith.extui %0 : i1 to i32
    %c0_i32_0 = arith.constant 0 : i32
    %2 = arith.cmpi ne, %1, %c0_i32_0 : i32
    scf.if %2 {
      %cst_129 = arith.constant 0.000000e+00 : f32
      %293 = vector.broadcast %cst_129 : f32 to vector<2x8x32xf32>
      %c0_130 = arith.constant 0 : index
      %c0_131 = arith.constant 0 : index
      %c0_132 = arith.constant 0 : index
      %294 = vector.load %arg12[%c0_130, %c0_131, %c0_132] : memref<2x8x32xf32, #tpu.memory_space<vmem>>, vector<2x8x32xf32>
      tpu.vector_store %arg12[%c0_130, %c0_131, %c0_132], %293 {strides = array<i32>} : memref<2x8x32xf32, #tpu.memory_space<vmem>>, vector<2x8x32xf32>,
      %cst_133 = arith.constant 0.000000e+00 : f32
      %295 = vector.broadcast %cst_133 : f32 to vector<2x8x32xf32>
      %c0_134 = arith.constant 0 : index
      %c0_135 = arith.constant 0 : index
      %c0_136 = arith.constant 0 : index
      %296 = vector.load %arg13[%c0_134, %c0_135, %c0_136] : memref<2x8x32xf32, #tpu.memory_space<vmem>>, vector<2x8x32xf32>
      tpu.vector_store %arg13[%c0_134, %c0_135, %c0_136], %295 {strides = array<i32>} : memref<2x8x32xf32, #tpu.memory_space<vmem>>, vector<2x8x32xf32>,
      %cst_137 = arith.constant 0.000000e+00 : f32
      %297 = vector.broadcast %cst_137 : f32 to vector<8x4xf32>
      %c0_138 = arith.constant 0 : index
      %c0_139 = arith.constant 0 : index
      %298 = vector.load %arg14[%c0_138, %c0_139] : memref<8x4xf32, #tpu.memory_space<vmem>>, vector<8x4xf32>
      tpu.vector_store %arg14[%c0_138, %c0_139], %297 {strides = array<i32>} : memref<8x4xf32, #tpu.memory_space<vmem>>, vector<8x4xf32>,
    } else {
    }
    %c0 = arith.constant 0 : index
    %c0_1 = arith.constant 0 : index
    %c0_2 = arith.constant 0 : index
    %3 = vector.load %arg2[%c0, %c0_1, %c0_2] : memref<4x8x4xf32, #tpu.memory_space<vmem>>, vector<4x8x4xf32>
    %4 = vector.shape_cast %3 : vector<4x8x4xf32> to vector<32x4xf32>
    %5 = arith.truncf %4 : vector<32x4xf32> to vector<32x4xbf16>
    %c0_3 = arith.constant 0 : index
    %c0_4 = arith.constant 0 : index
    %6 = vector.load %arg3[%c0_3, %c0_4] : memref<4x128xbf16, #tpu.memory_space<vmem>>, vector<4x128xbf16>
    %cst = arith.constant dense<0.000000e+00> : vector<32x128xf32>
    %7 = tpu.matmul %5, %6, %cst {dimension_numbers = #tpu.dot_dimension_numbers<[1], [0], [0], [1], [0, 0, 1, 1], [], []>} : vector<32x4xbf16>, vector<4x128xbf16>, vector<32x128xf32> -> vector<32x128xf32>
    %c0_5 = arith.constant 0 : index
    %c0_6 = arith.constant 0 : index
    %c0_7 = arith.constant 0 : index
    %8 = vector.load %arg6[%c0_5, %c0_6, %c0_7] : memref<2x1x128xf32, #tpu.memory_space<vmem>>, vector<1x1x128xf32>
    %9 = vector.shape_cast %8 : vector<1x1x128xf32> to vector<1x128xf32>
    %10 = vector.broadcast %9 : vector<1x128xf32> to vector<32x128xf32>
    %11 = arith.addf %7, %10 : vector<32x128xf32>
    %12 = vector.shape_cast %11 : vector<32x128xf32> to vector<4x8x128xf32>
    %c0_8 = arith.constant 0 : index
    %c0_9 = arith.constant 0 : index
    %c0_10 = arith.constant 0 : index
    %13 = vector.load %arg11[%c0_8, %c0_9, %c0_10] : memref<4x8x128xf32, #tpu.memory_space<vmem>>, vector<4x8x128xf32>
    tpu.vector_store %arg11[%c0_8, %c0_9, %c0_10], %12 {strides = array<i32>} : memref<4x8x128xf32, #tpu.memory_space<vmem>>, vector<4x8x128xf32>,
    %c0_11 = arith.constant 0 : index
    %c0_12 = arith.constant 0 : index
    %c0_13 = arith.constant 0 : index
    %14 = vector.load %arg5[%c0_11, %c0_12, %c0_13] : memref<2x32x128xbf16, #tpu.memory_space<vmem>>, vector<1x32x128xbf16>
    %15 = vector.shape_cast %14 : vector<1x32x128xbf16> to vector<32x128xbf16>
    %c0_14 = arith.constant 0 : index
    %c0_15 = arith.constant 0 : index
    %c0_16 = arith.constant 0 : index
    %16 = vector.load %arg12[%c0_14, %c0_15, %c0_16] : memref<2x8x32xf32, #tpu.memory_space<vmem>>, vector<1x8x32xf32>
    %17 = vector.shape_cast %16 : vector<1x8x32xf32> to vector<8x32xf32>
    %c0_17 = arith.constant 0 : index
    %c0_18 = arith.constant 0 : index
    %c0_19 = arith.constant 0 : index
    %18 = vector.load %arg13[%c0_17, %c0_18, %c0_19] : memref<2x8x32xf32, #tpu.memory_space<vmem>>, vector<1x8x32xf32>
    %19 = vector.shape_cast %18 : vector<1x8x32xf32> to vector<8x32xf32>
    %c0_i32_20 = arith.constant 0 : i32
    %20 = arith.index_cast %c0_i32_20 : i32 to index
    %c0_21 = arith.constant 0 : index
    %c0_22 = arith.constant 0 : index
    %21 = vector.load %arg11[%20, %c0_21, %c0_22] : memref<4x8x128xf32, #tpu.memory_space<vmem>>, vector<1x8x128xf32>
    %22 = vector.shape_cast %21 : vector<1x8x128xf32> to vector<8x128xf32>
    %23 = arith.truncf %17 : vector<8x32xf32> to vector<8x32xbf16>
    %cst_23 = arith.constant dense<0.000000e+00> : vector<8x128xf32>
    %24 = tpu.matmul %23, %15, %cst_23 {dimension_numbers = #tpu.dot_dimension_numbers<[1], [0], [0], [1], [0, 0, 1, 1], [], []>} : vector<8x32xbf16>, vector<32x128xbf16>, vector<8x128xf32> -> vector<8x128xf32>
    %25 = arith.addf %22, %24 : vector<8x128xf32>
    %26 = vector.extract_strided_slice %25 {offsets = [0, 0], sizes = [8, 96], strides = [1, 1]} : vector<8x128xf32> to vector<8x96xf32>
    %27 = arith.negf %26 : vector<8x96xf32>
    %28 = math.exp %27 : vector<8x96xf32>
    %cst_24 = arith.constant 1.000000e+00 : f32
    %29 = vector.broadcast %cst_24 : f32 to vector<8x96xf32>
    %30 = arith.addf %29, %28 : vector<8x96xf32>
    %31 = arith.divf %29, %30 : vector<8x96xf32>
    %32 = vector.extract_strided_slice %25 {offsets = [0, 96], sizes = [8, 32], strides = [1, 1]} : vector<8x128xf32> to vector<8x32xf32>
    %33 = math.tanh %32 : vector<8x32xf32>
    %34 = vector.extract_strided_slice %31 {offsets = [0, 32], sizes = [8, 32], strides = [1, 1]} : vector<8x96xf32> to vector<8x32xf32>
    %35 = arith.mulf %34, %19 : vector<8x32xf32>
    %36 = vector.extract_strided_slice %31 {offsets = [0, 0], sizes = [8, 32], strides = [1, 1]} : vector<8x96xf32> to vector<8x32xf32>
    %37 = arith.mulf %36, %33 : vector<8x32xf32>
    %38 = arith.addf %35, %37 : vector<8x32xf32>
    %39 = vector.extract_strided_slice %31 {offsets = [0, 64], sizes = [8, 32], strides = [1, 1]} : vector<8x96xf32> to vector<8x32xf32>
    %40 = math.tanh %38 : vector<8x32xf32>
    %41 = arith.mulf %39, %40 : vector<8x32xf32>
    %42 = arith.index_cast %c0_i32_20 : i32 to index
    %c0_25 = arith.constant 0 : index
    %c0_26 = arith.constant 0 : index
    %43 = vector.load %arg10[%42, %c0_25, %c0_26] : memref<4x8x32xf32, #tpu.memory_space<vmem>>, vector<1x8x32xf32>
    %44 = vector.shape_cast %43 : vector<1x8x32xf32> to vector<8x32xf32>
    %45 = vector.shape_cast %41 : vector<8x32xf32> to vector<1x8x32xf32>
    tpu.vector_store %arg10[%42, %c0_25, %c0_26], %45 {strides = array<i32>} : memref<4x8x32xf32, #tpu.memory_space<vmem>>, vector<1x8x32xf32>,
    %c1_i32 = arith.constant 1 : i32
    %46 = arith.index_cast %c1_i32 : i32 to index
    %c0_27 = arith.constant 0 : index
    %c0_28 = arith.constant 0 : index
    %47 = vector.load %arg11[%46, %c0_27, %c0_28] : memref<4x8x128xf32, #tpu.memory_space<vmem>>, vector<1x8x128xf32>
    %48 = vector.shape_cast %47 : vector<1x8x128xf32> to vector<8x128xf32>
    %49 = arith.truncf %41 : vector<8x32xf32> to vector<8x32xbf16>
    %cst_29 = arith.constant dense<0.000000e+00> : vector<8x128xf32>
    %50 = tpu.matmul %49, %15, %cst_29 {dimension_numbers = #tpu.dot_dimension_numbers<[1], [0], [0], [1], [0, 0, 1, 1], [], []>} : vector<8x32xbf16>, vector<32x128xbf16>, vector<8x128xf32> -> vector<8x128xf32>
    %51 = arith.addf %48, %50 : vector<8x128xf32>
    %52 = vector.extract_strided_slice %51 {offsets = [0, 0], sizes = [8, 96], strides = [1, 1]} : vector<8x128xf32> to vector<8x96xf32>
    %53 = arith.negf %52 : vector<8x96xf32>
    %54 = math.exp %53 : vector<8x96xf32>
    %cst_30 = arith.constant 1.000000e+00 : f32
    %55 = vector.broadcast %cst_30 : f32 to vector<8x96xf32>
    %56 = arith.addf %55, %54 : vector<8x96xf32>
    %57 = arith.divf %55, %56 : vector<8x96xf32>
    %58 = vector.extract_strided_slice %51 {offsets = [0, 96], sizes = [8, 32], strides = [1, 1]} : vector<8x128xf32> to vector<8x32xf32>
    %59 = math.tanh %58 : vector<8x32xf32>
    %60 = vector.extract_strided_slice %57 {offsets = [0, 32], sizes = [8, 32], strides = [1, 1]} : vector<8x96xf32> to vector<8x32xf32>
    %61 = arith.mulf %60, %38 : vector<8x32xf32>
    %62 = vector.extract_strided_slice %57 {offsets = [0, 0], sizes = [8, 32], strides = [1, 1]} : vector<8x96xf32> to vector<8x32xf32>
    %63 = arith.mulf %62, %59 : vector<8x32xf32>
    %64 = arith.addf %61, %63 : vector<8x32xf32>
    %65 = vector.extract_strided_slice %57 {offsets = [0, 64], sizes = [8, 32], strides = [1, 1]} : vector<8x96xf32> to vector<8x32xf32>
    %66 = math.tanh %64 : vector<8x32xf32>
    %67 = arith.mulf %65, %66 : vector<8x32xf32>
    %68 = arith.index_cast %c1_i32 : i32 to index
    %c0_31 = arith.constant 0 : index
    %c0_32 = arith.constant 0 : index
    %69 = vector.load %arg10[%68, %c0_31, %c0_32] : memref<4x8x32xf32, #tpu.memory_space<vmem>>, vector<1x8x32xf32>
    %70 = vector.shape_cast %69 : vector<1x8x32xf32> to vector<8x32xf32>
    %71 = vector.shape_cast %67 : vector<8x32xf32> to vector<1x8x32xf32>
    tpu.vector_store %arg10[%68, %c0_31, %c0_32], %71 {strides = array<i32>} : memref<4x8x32xf32, #tpu.memory_space<vmem>>, vector<1x8x32xf32>,
    %c2_i32 = arith.constant 2 : i32
    %72 = arith.index_cast %c2_i32 : i32 to index
    %c0_33 = arith.constant 0 : index
    %c0_34 = arith.constant 0 : index
    %73 = vector.load %arg11[%72, %c0_33, %c0_34] : memref<4x8x128xf32, #tpu.memory_space<vmem>>, vector<1x8x128xf32>
    %74 = vector.shape_cast %73 : vector<1x8x128xf32> to vector<8x128xf32>
    %75 = arith.truncf %67 : vector<8x32xf32> to vector<8x32xbf16>
    %cst_35 = arith.constant dense<0.000000e+00> : vector<8x128xf32>
    %76 = tpu.matmul %75, %15, %cst_35 {dimension_numbers = #tpu.dot_dimension_numbers<[1], [0], [0], [1], [0, 0, 1, 1], [], []>} : vector<8x32xbf16>, vector<32x128xbf16>, vector<8x128xf32> -> vector<8x128xf32>
    %77 = arith.addf %74, %76 : vector<8x128xf32>
    %78 = vector.extract_strided_slice %77 {offsets = [0, 0], sizes = [8, 96], strides = [1, 1]} : vector<8x128xf32> to vector<8x96xf32>
    %79 = arith.negf %78 : vector<8x96xf32>
    %80 = math.exp %79 : vector<8x96xf32>
    %cst_36 = arith.constant 1.000000e+00 : f32
    %81 = vector.broadcast %cst_36 : f32 to vector<8x96xf32>
    %82 = arith.addf %81, %80 : vector<8x96xf32>
    %83 = arith.divf %81, %82 : vector<8x96xf32>
    %84 = vector.extract_strided_slice %77 {offsets = [0, 96], sizes = [8, 32], strides = [1, 1]} : vector<8x128xf32> to vector<8x32xf32>
    %85 = math.tanh %84 : vector<8x32xf32>
    %86 = vector.extract_strided_slice %83 {offsets = [0, 32], sizes = [8, 32], strides = [1, 1]} : vector<8x96xf32> to vector<8x32xf32>
    %87 = arith.mulf %86, %64 : vector<8x32xf32>
    %88 = vector.extract_strided_slice %83 {offsets = [0, 0], sizes = [8, 32], strides = [1, 1]} : vector<8x96xf32> to vector<8x32xf32>
    %89 = arith.mulf %88, %85 : vector<8x32xf32>
    %90 = arith.addf %87, %89 : vector<8x32xf32>
    %91 = vector.extract_strided_slice %83 {offsets = [0, 64], sizes = [8, 32], strides = [1, 1]} : vector<8x96xf32> to vector<8x32xf32>
    %92 = math.tanh %90 : vector<8x32xf32>
    %93 = arith.mulf %91, %92 : vector<8x32xf32>
    %94 = arith.index_cast %c2_i32 : i32 to index
    %c0_37 = arith.constant 0 : index
    %c0_38 = arith.constant 0 : index
    %95 = vector.load %arg10[%94, %c0_37, %c0_38] : memref<4x8x32xf32, #tpu.memory_space<vmem>>, vector<1x8x32xf32>
    %96 = vector.shape_cast %95 : vector<1x8x32xf32> to vector<8x32xf32>
    %97 = vector.shape_cast %93 : vector<8x32xf32> to vector<1x8x32xf32>
    tpu.vector_store %arg10[%94, %c0_37, %c0_38], %97 {strides = array<i32>} : memref<4x8x32xf32, #tpu.memory_space<vmem>>, vector<1x8x32xf32>,
    %c3_i32 = arith.constant 3 : i32
    %98 = arith.index_cast %c3_i32 : i32 to index
    %c0_39 = arith.constant 0 : index
    %c0_40 = arith.constant 0 : index
    %99 = vector.load %arg11[%98, %c0_39, %c0_40] : memref<4x8x128xf32, #tpu.memory_space<vmem>>, vector<1x8x128xf32>
    %100 = vector.shape_cast %99 : vector<1x8x128xf32> to vector<8x128xf32>
    %101 = arith.truncf %93 : vector<8x32xf32> to vector<8x32xbf16>
    %cst_41 = arith.constant dense<0.000000e+00> : vector<8x128xf32>
    %102 = tpu.matmul %101, %15, %cst_41 {dimension_numbers = #tpu.dot_dimension_numbers<[1], [0], [0], [1], [0, 0, 1, 1], [], []>} : vector<8x32xbf16>, vector<32x128xbf16>, vector<8x128xf32> -> vector<8x128xf32>
    %103 = arith.addf %100, %102 : vector<8x128xf32>
    %104 = vector.extract_strided_slice %103 {offsets = [0, 0], sizes = [8, 96], strides = [1, 1]} : vector<8x128xf32> to vector<8x96xf32>
    %105 = arith.negf %104 : vector<8x96xf32>
    %106 = math.exp %105 : vector<8x96xf32>
    %cst_42 = arith.constant 1.000000e+00 : f32
    %107 = vector.broadcast %cst_42 : f32 to vector<8x96xf32>
    %108 = arith.addf %107, %106 : vector<8x96xf32>
    %109 = arith.divf %107, %108 : vector<8x96xf32>
    %110 = vector.extract_strided_slice %103 {offsets = [0, 96], sizes = [8, 32], strides = [1, 1]} : vector<8x128xf32> to vector<8x32xf32>
    %111 = math.tanh %110 : vector<8x32xf32>
    %112 = vector.extract_strided_slice %109 {offsets = [0, 32], sizes = [8, 32], strides = [1, 1]} : vector<8x96xf32> to vector<8x32xf32>
    %113 = arith.mulf %112, %90 : vector<8x32xf32>
    %114 = vector.extract_strided_slice %109 {offsets = [0, 0], sizes = [8, 32], strides = [1, 1]} : vector<8x96xf32> to vector<8x32xf32>
    %115 = arith.mulf %114, %111 : vector<8x32xf32>
    %116 = arith.addf %113, %115 : vector<8x32xf32>
    %117 = vector.extract_strided_slice %109 {offsets = [0, 64], sizes = [8, 32], strides = [1, 1]} : vector<8x96xf32> to vector<8x32xf32>
    %118 = math.tanh %116 : vector<8x32xf32>
    %119 = arith.mulf %117, %118 : vector<8x32xf32>
    %120 = arith.index_cast %c3_i32 : i32 to index
    %c0_43 = arith.constant 0 : index
    %c0_44 = arith.constant 0 : index
    %121 = vector.load %arg10[%120, %c0_43, %c0_44] : memref<4x8x32xf32, #tpu.memory_space<vmem>>, vector<1x8x32xf32>
    %122 = vector.shape_cast %121 : vector<1x8x32xf32> to vector<8x32xf32>
    %123 = vector.shape_cast %119 : vector<8x32xf32> to vector<1x8x32xf32>
    tpu.vector_store %arg10[%120, %c0_43, %c0_44], %123 {strides = array<i32>} : memref<4x8x32xf32, #tpu.memory_space<vmem>>, vector<1x8x32xf32>,
    %c4_i32 = arith.constant 4 : i32
    %c0_45 = arith.constant 0 : index
    %c0_46 = arith.constant 0 : index
    %c0_47 = arith.constant 0 : index
    %124 = vector.load %arg12[%c0_45, %c0_46, %c0_47] : memref<2x8x32xf32, #tpu.memory_space<vmem>>, vector<1x8x32xf32>
    %125 = vector.shape_cast %124 : vector<1x8x32xf32> to vector<8x32xf32>
    %126 = vector.shape_cast %119 : vector<8x32xf32> to vector<1x8x32xf32>
    tpu.vector_store %arg12[%c0_45, %c0_46, %c0_47], %126 {strides = array<i32>} : memref<2x8x32xf32, #tpu.memory_space<vmem>>, vector<1x8x32xf32>,
    %c0_48 = arith.constant 0 : index
    %c0_49 = arith.constant 0 : index
    %c0_50 = arith.constant 0 : index
    %127 = vector.load %arg13[%c0_48, %c0_49, %c0_50] : memref<2x8x32xf32, #tpu.memory_space<vmem>>, vector<1x8x32xf32>
    %128 = vector.shape_cast %127 : vector<1x8x32xf32> to vector<8x32xf32>
    %129 = vector.shape_cast %116 : vector<8x32xf32> to vector<1x8x32xf32>
    tpu.vector_store %arg13[%c0_48, %c0_49, %c0_50], %129 {strides = array<i32>} : memref<2x8x32xf32, #tpu.memory_space<vmem>>, vector<1x8x32xf32>,
    %c0_51 = arith.constant 0 : index
    %c0_52 = arith.constant 0 : index
    %c0_53 = arith.constant 0 : index
    %130 = vector.load %arg10[%c0_51, %c0_52, %c0_53] : memref<4x8x32xf32, #tpu.memory_space<vmem>>, vector<4x8x32xf32>
    %131 = vector.shape_cast %130 : vector<4x8x32xf32> to vector<32x32xf32>
    %132 = arith.truncf %131 : vector<32x32xf32> to vector<32x32xbf16>
    %c0_54 = arith.constant 0 : index
    %c0_55 = arith.constant 0 : index
    %c0_56 = arith.constant 0 : index
    %133 = vector.load %arg4[%c0_54, %c0_55, %c0_56] : memref<1x32x128xbf16, #tpu.memory_space<vmem>>, vector<1x32x128xbf16>
    %134 = vector.shape_cast %133 : vector<1x32x128xbf16> to vector<32x128xbf16>
    %cst_57 = arith.constant dense<0.000000e+00> : vector<32x128xf32>
    %135 = tpu.matmul %132, %134, %cst_57 {dimension_numbers = #tpu.dot_dimension_numbers<[1], [0], [0], [1], [0, 0, 1, 1], [], []>} : vector<32x32xbf16>, vector<32x128xbf16>, vector<32x128xf32> -> vector<32x128xf32>
    %c1 = arith.constant 1 : index
    %c0_58 = arith.constant 0 : index
    %c0_59 = arith.constant 0 : index
    %136 = vector.load %arg6[%c1, %c0_58, %c0_59] : memref<2x1x128xf32, #tpu.memory_space<vmem>>, vector<1x1x128xf32>
    %137 = vector.shape_cast %136 : vector<1x1x128xf32> to vector<1x128xf32>
    %138 = vector.broadcast %137 : vector<1x128xf32> to vector<32x128xf32>
    %139 = arith.addf %135, %138 : vector<32x128xf32>
    %140 = vector.shape_cast %139 : vector<32x128xf32> to vector<4x8x128xf32>
    %c0_60 = arith.constant 0 : index
    %c0_61 = arith.constant 0 : index
    %c0_62 = arith.constant 0 : index
    %141 = vector.load %arg11[%c0_60, %c0_61, %c0_62] : memref<4x8x128xf32, #tpu.memory_space<vmem>>, vector<4x8x128xf32>
    tpu.vector_store %arg11[%c0_60, %c0_61, %c0_62], %140 {strides = array<i32>} : memref<4x8x128xf32, #tpu.memory_space<vmem>>, vector<4x8x128xf32>,
    %c1_63 = arith.constant 1 : index
    %c0_64 = arith.constant 0 : index
    %c0_65 = arith.constant 0 : index
    %142 = vector.load %arg5[%c1_63, %c0_64, %c0_65] : memref<2x32x128xbf16, #tpu.memory_space<vmem>>, vector<1x32x128xbf16>
    %143 = vector.shape_cast %142 : vector<1x32x128xbf16> to vector<32x128xbf16>
    %c1_66 = arith.constant 1 : index
    %c0_67 = arith.constant 0 : index
    %c0_68 = arith.constant 0 : index
    %144 = vector.load %arg12[%c1_66, %c0_67, %c0_68] : memref<2x8x32xf32, #tpu.memory_space<vmem>>, vector<1x8x32xf32>
    %145 = vector.shape_cast %144 : vector<1x8x32xf32> to vector<8x32xf32>
    %c1_69 = arith.constant 1 : index
    %c0_70 = arith.constant 0 : index
    %c0_71 = arith.constant 0 : index
    %146 = vector.load %arg13[%c1_69, %c0_70, %c0_71] : memref<2x8x32xf32, #tpu.memory_space<vmem>>, vector<1x8x32xf32>
    %147 = vector.shape_cast %146 : vector<1x8x32xf32> to vector<8x32xf32>
    %c0_i32_72 = arith.constant 0 : i32
    %148 = arith.index_cast %c0_i32_72 : i32 to index
    %c0_73 = arith.constant 0 : index
    %c0_74 = arith.constant 0 : index
    %149 = vector.load %arg11[%148, %c0_73, %c0_74] : memref<4x8x128xf32, #tpu.memory_space<vmem>>, vector<1x8x128xf32>
    %150 = vector.shape_cast %149 : vector<1x8x128xf32> to vector<8x128xf32>
    %151 = arith.truncf %145 : vector<8x32xf32> to vector<8x32xbf16>
    %cst_75 = arith.constant dense<0.000000e+00> : vector<8x128xf32>
    %152 = tpu.matmul %151, %143, %cst_75 {dimension_numbers = #tpu.dot_dimension_numbers<[1], [0], [0], [1], [0, 0, 1, 1], [], []>} : vector<8x32xbf16>, vector<32x128xbf16>, vector<8x128xf32> -> vector<8x128xf32>
    %153 = arith.addf %150, %152 : vector<8x128xf32>
    %154 = vector.extract_strided_slice %153 {offsets = [0, 0], sizes = [8, 96], strides = [1, 1]} : vector<8x128xf32> to vector<8x96xf32>
    %155 = arith.negf %154 : vector<8x96xf32>
    %156 = math.exp %155 : vector<8x96xf32>
    %cst_76 = arith.constant 1.000000e+00 : f32
    %157 = vector.broadcast %cst_76 : f32 to vector<8x96xf32>
    %158 = arith.addf %157, %156 : vector<8x96xf32>
    %159 = arith.divf %157, %158 : vector<8x96xf32>
    %160 = vector.extract_strided_slice %153 {offsets = [0, 96], sizes = [8, 32], strides = [1, 1]} : vector<8x128xf32> to vector<8x32xf32>
    %161 = math.tanh %160 : vector<8x32xf32>
    %162 = vector.extract_strided_slice %159 {offsets = [0, 32], sizes = [8, 32], strides = [1, 1]} : vector<8x96xf32> to vector<8x32xf32>
    %163 = arith.mulf %162, %147 : vector<8x32xf32>
    %164 = vector.extract_strided_slice %159 {offsets = [0, 0], sizes = [8, 32], strides = [1, 1]} : vector<8x96xf32> to vector<8x32xf32>
    %165 = arith.mulf %164, %161 : vector<8x32xf32>
    %166 = arith.addf %163, %165 : vector<8x32xf32>
    %167 = vector.extract_strided_slice %159 {offsets = [0, 64], sizes = [8, 32], strides = [1, 1]} : vector<8x96xf32> to vector<8x32xf32>
    %168 = math.tanh %166 : vector<8x32xf32>
    %169 = arith.mulf %167, %168 : vector<8x32xf32>
    %170 = arith.index_cast %c0_i32_72 : i32 to index
    %c0_77 = arith.constant 0 : index
    %c0_78 = arith.constant 0 : index
    %171 = vector.load %arg10[%170, %c0_77, %c0_78] : memref<4x8x32xf32, #tpu.memory_space<vmem>>, vector<1x8x32xf32>
    %172 = vector.shape_cast %171 : vector<1x8x32xf32> to vector<8x32xf32>
    %173 = vector.shape_cast %169 : vector<8x32xf32> to vector<1x8x32xf32>
    tpu.vector_store %arg10[%170, %c0_77, %c0_78], %173 {strides = array<i32>} : memref<4x8x32xf32, #tpu.memory_space<vmem>>, vector<1x8x32xf32>,
    %c1_i32_79 = arith.constant 1 : i32
    %174 = arith.index_cast %c1_i32_79 : i32 to index
    %c0_80 = arith.constant 0 : index
    %c0_81 = arith.constant 0 : index
    %175 = vector.load %arg11[%174, %c0_80, %c0_81] : memref<4x8x128xf32, #tpu.memory_space<vmem>>, vector<1x8x128xf32>
    %176 = vector.shape_cast %175 : vector<1x8x128xf32> to vector<8x128xf32>
    %177 = arith.truncf %169 : vector<8x32xf32> to vector<8x32xbf16>
    %cst_82 = arith.constant dense<0.000000e+00> : vector<8x128xf32>
    %178 = tpu.matmul %177, %143, %cst_82 {dimension_numbers = #tpu.dot_dimension_numbers<[1], [0], [0], [1], [0, 0, 1, 1], [], []>} : vector<8x32xbf16>, vector<32x128xbf16>, vector<8x128xf32> -> vector<8x128xf32>
    %179 = arith.addf %176, %178 : vector<8x128xf32>
    %180 = vector.extract_strided_slice %179 {offsets = [0, 0], sizes = [8, 96], strides = [1, 1]} : vector<8x128xf32> to vector<8x96xf32>
    %181 = arith.negf %180 : vector<8x96xf32>
    %182 = math.exp %181 : vector<8x96xf32>
    %cst_83 = arith.constant 1.000000e+00 : f32
    %183 = vector.broadcast %cst_83 : f32 to vector<8x96xf32>
    %184 = arith.addf %183, %182 : vector<8x96xf32>
    %185 = arith.divf %183, %184 : vector<8x96xf32>
    %186 = vector.extract_strided_slice %179 {offsets = [0, 96], sizes = [8, 32], strides = [1, 1]} : vector<8x128xf32> to vector<8x32xf32>
    %187 = math.tanh %186 : vector<8x32xf32>
    %188 = vector.extract_strided_slice %185 {offsets = [0, 32], sizes = [8, 32], strides = [1, 1]} : vector<8x96xf32> to vector<8x32xf32>
    %189 = arith.mulf %188, %166 : vector<8x32xf32>
    %190 = vector.extract_strided_slice %185 {offsets = [0, 0], sizes = [8, 32], strides = [1, 1]} : vector<8x96xf32> to vector<8x32xf32>
    %191 = arith.mulf %190, %187 : vector<8x32xf32>
    %192 = arith.addf %189, %191 : vector<8x32xf32>
    %193 = vector.extract_strided_slice %185 {offsets = [0, 64], sizes = [8, 32], strides = [1, 1]} : vector<8x96xf32> to vector<8x32xf32>
    %194 = math.tanh %192 : vector<8x32xf32>
    %195 = arith.mulf %193, %194 : vector<8x32xf32>
    %196 = arith.index_cast %c1_i32_79 : i32 to index
    %c0_84 = arith.constant 0 : index
    %c0_85 = arith.constant 0 : index
    %197 = vector.load %arg10[%196, %c0_84, %c0_85] : memref<4x8x32xf32, #tpu.memory_space<vmem>>, vector<1x8x32xf32>
    %198 = vector.shape_cast %197 : vector<1x8x32xf32> to vector<8x32xf32>
    %199 = vector.shape_cast %195 : vector<8x32xf32> to vector<1x8x32xf32>
    tpu.vector_store %arg10[%196, %c0_84, %c0_85], %199 {strides = array<i32>} : memref<4x8x32xf32, #tpu.memory_space<vmem>>, vector<1x8x32xf32>,
    %c2_i32_86 = arith.constant 2 : i32
    %200 = arith.index_cast %c2_i32_86 : i32 to index
    %c0_87 = arith.constant 0 : index
    %c0_88 = arith.constant 0 : index
    %201 = vector.load %arg11[%200, %c0_87, %c0_88] : memref<4x8x128xf32, #tpu.memory_space<vmem>>, vector<1x8x128xf32>
    %202 = vector.shape_cast %201 : vector<1x8x128xf32> to vector<8x128xf32>
    %203 = arith.truncf %195 : vector<8x32xf32> to vector<8x32xbf16>
    %cst_89 = arith.constant dense<0.000000e+00> : vector<8x128xf32>
    %204 = tpu.matmul %203, %143, %cst_89 {dimension_numbers = #tpu.dot_dimension_numbers<[1], [0], [0], [1], [0, 0, 1, 1], [], []>} : vector<8x32xbf16>, vector<32x128xbf16>, vector<8x128xf32> -> vector<8x128xf32>
    %205 = arith.addf %202, %204 : vector<8x128xf32>
    %206 = vector.extract_strided_slice %205 {offsets = [0, 0], sizes = [8, 96], strides = [1, 1]} : vector<8x128xf32> to vector<8x96xf32>
    %207 = arith.negf %206 : vector<8x96xf32>
    %208 = math.exp %207 : vector<8x96xf32>
    %cst_90 = arith.constant 1.000000e+00 : f32
    %209 = vector.broadcast %cst_90 : f32 to vector<8x96xf32>
    %210 = arith.addf %209, %208 : vector<8x96xf32>
    %211 = arith.divf %209, %210 : vector<8x96xf32>
    %212 = vector.extract_strided_slice %205 {offsets = [0, 96], sizes = [8, 32], strides = [1, 1]} : vector<8x128xf32> to vector<8x32xf32>
    %213 = math.tanh %212 : vector<8x32xf32>
    %214 = vector.extract_strided_slice %211 {offsets = [0, 32], sizes = [8, 32], strides = [1, 1]} : vector<8x96xf32> to vector<8x32xf32>
    %215 = arith.mulf %214, %192 : vector<8x32xf32>
    %216 = vector.extract_strided_slice %211 {offsets = [0, 0], sizes = [8, 32], strides = [1, 1]} : vector<8x96xf32> to vector<8x32xf32>
    %217 = arith.mulf %216, %213 : vector<8x32xf32>
    %218 = arith.addf %215, %217 : vector<8x32xf32>
    %219 = vector.extract_strided_slice %211 {offsets = [0, 64], sizes = [8, 32], strides = [1, 1]} : vector<8x96xf32> to vector<8x32xf32>
    %220 = math.tanh %218 : vector<8x32xf32>
    %221 = arith.mulf %219, %220 : vector<8x32xf32>
    %222 = arith.index_cast %c2_i32_86 : i32 to index
    %c0_91 = arith.constant 0 : index
    %c0_92 = arith.constant 0 : index
    %223 = vector.load %arg10[%222, %c0_91, %c0_92] : memref<4x8x32xf32, #tpu.memory_space<vmem>>, vector<1x8x32xf32>
    %224 = vector.shape_cast %223 : vector<1x8x32xf32> to vector<8x32xf32>
    %225 = vector.shape_cast %221 : vector<8x32xf32> to vector<1x8x32xf32>
    tpu.vector_store %arg10[%222, %c0_91, %c0_92], %225 {strides = array<i32>} : memref<4x8x32xf32, #tpu.memory_space<vmem>>, vector<1x8x32xf32>,
    %c3_i32_93 = arith.constant 3 : i32
    %226 = arith.index_cast %c3_i32_93 : i32 to index
    %c0_94 = arith.constant 0 : index
    %c0_95 = arith.constant 0 : index
    %227 = vector.load %arg11[%226, %c0_94, %c0_95] : memref<4x8x128xf32, #tpu.memory_space<vmem>>, vector<1x8x128xf32>
    %228 = vector.shape_cast %227 : vector<1x8x128xf32> to vector<8x128xf32>
    %229 = arith.truncf %221 : vector<8x32xf32> to vector<8x32xbf16>
    %cst_96 = arith.constant dense<0.000000e+00> : vector<8x128xf32>
    %230 = tpu.matmul %229, %143, %cst_96 {dimension_numbers = #tpu.dot_dimension_numbers<[1], [0], [0], [1], [0, 0, 1, 1], [], []>} : vector<8x32xbf16>, vector<32x128xbf16>, vector<8x128xf32> -> vector<8x128xf32>
    %231 = arith.addf %228, %230 : vector<8x128xf32>
    %232 = vector.extract_strided_slice %231 {offsets = [0, 0], sizes = [8, 96], strides = [1, 1]} : vector<8x128xf32> to vector<8x96xf32>
    %233 = arith.negf %232 : vector<8x96xf32>
    %234 = math.exp %233 : vector<8x96xf32>
    %cst_97 = arith.constant 1.000000e+00 : f32
    %235 = vector.broadcast %cst_97 : f32 to vector<8x96xf32>
    %236 = arith.addf %235, %234 : vector<8x96xf32>
    %237 = arith.divf %235, %236 : vector<8x96xf32>
    %238 = vector.extract_strided_slice %231 {offsets = [0, 96], sizes = [8, 32], strides = [1, 1]} : vector<8x128xf32> to vector<8x32xf32>
    %239 = math.tanh %238 : vector<8x32xf32>
    %240 = vector.extract_strided_slice %237 {offsets = [0, 32], sizes = [8, 32], strides = [1, 1]} : vector<8x96xf32> to vector<8x32xf32>
    %241 = arith.mulf %240, %218 : vector<8x32xf32>
    %242 = vector.extract_strided_slice %237 {offsets = [0, 0], sizes = [8, 32], strides = [1, 1]} : vector<8x96xf32> to vector<8x32xf32>
    %243 = arith.mulf %242, %239 : vector<8x32xf32>
    %244 = arith.addf %241, %243 : vector<8x32xf32>
    %245 = vector.extract_strided_slice %237 {offsets = [0, 64], sizes = [8, 32], strides = [1, 1]} : vector<8x96xf32> to vector<8x32xf32>
    %246 = math.tanh %244 : vector<8x32xf32>
    %247 = arith.mulf %245, %246 : vector<8x32xf32>
    %248 = arith.index_cast %c3_i32_93 : i32 to index
    %c0_98 = arith.constant 0 : index
    %c0_99 = arith.constant 0 : index
    %249 = vector.load %arg10[%248, %c0_98, %c0_99] : memref<4x8x32xf32, #tpu.memory_space<vmem>>, vector<1x8x32xf32>
    %250 = vector.shape_cast %249 : vector<1x8x32xf32> to vector<8x32xf32>
    %251 = vector.shape_cast %247 : vector<8x32xf32> to vector<1x8x32xf32>
    tpu.vector_store %arg10[%248, %c0_98, %c0_99], %251 {strides = array<i32>} : memref<4x8x32xf32, #tpu.memory_space<vmem>>, vector<1x8x32xf32>,
    %c4_i32_100 = arith.constant 4 : i32
    %c1_101 = arith.constant 1 : index
    %c0_102 = arith.constant 0 : index
    %c0_103 = arith.constant 0 : index
    %252 = vector.load %arg12[%c1_101, %c0_102, %c0_103] : memref<2x8x32xf32, #tpu.memory_space<vmem>>, vector<1x8x32xf32>
    %253 = vector.shape_cast %252 : vector<1x8x32xf32> to vector<8x32xf32>
    %254 = vector.shape_cast %247 : vector<8x32xf32> to vector<1x8x32xf32>
    tpu.vector_store %arg12[%c1_101, %c0_102, %c0_103], %254 {strides = array<i32>} : memref<2x8x32xf32, #tpu.memory_space<vmem>>, vector<1x8x32xf32>,
    %c1_104 = arith.constant 1 : index
    %c0_105 = arith.constant 0 : index
    %c0_106 = arith.constant 0 : index
    %255 = vector.load %arg13[%c1_104, %c0_105, %c0_106] : memref<2x8x32xf32, #tpu.memory_space<vmem>>, vector<1x8x32xf32>
    %256 = vector.shape_cast %255 : vector<1x8x32xf32> to vector<8x32xf32>
    %257 = vector.shape_cast %244 : vector<8x32xf32> to vector<1x8x32xf32>
    tpu.vector_store %arg13[%c1_104, %c0_105, %c0_106], %257 {strides = array<i32>} : memref<2x8x32xf32, #tpu.memory_space<vmem>>, vector<1x8x32xf32>,
    %c0_107 = arith.constant 0 : index
    %c0_108 = arith.constant 0 : index
    %c0_109 = arith.constant 0 : index
    %258 = vector.load %arg10[%c0_107, %c0_108, %c0_109] : memref<4x8x32xf32, #tpu.memory_space<vmem>>, vector<4x8x32xf32>
    %259 = vector.shape_cast %258 : vector<4x8x32xf32> to vector<32x32xf32>
    %260 = arith.truncf %259 : vector<32x32xf32> to vector<32x32xbf16>
    %c0_110 = arith.constant 0 : index
    %c0_111 = arith.constant 0 : index
    %261 = vector.load %arg7[%c0_110, %c0_111] : memref<32x4xbf16, #tpu.memory_space<vmem>>, vector<32x4xbf16>
    %cst_112 = arith.constant dense<0.000000e+00> : vector<32x4xf32>
    %262 = tpu.matmul %260, %261, %cst_112 {dimension_numbers = #tpu.dot_dimension_numbers<[1], [0], [0], [1], [0, 0, 1, 1], [], []>} : vector<32x32xbf16>, vector<32x4xbf16>, vector<32x4xf32> -> vector<32x4xf32>
    %c0_113 = arith.constant 0 : index
    %c0_114 = arith.constant 0 : index
    %263 = vector.load %arg8[%c0_113, %c0_114] : memref<1x4xf32, #tpu.memory_space<vmem>>, vector<1x4xf32>
    %264 = vector.broadcast %263 : vector<1x4xf32> to vector<32x4xf32>
    %265 = arith.addf %262, %264 : vector<32x4xf32>
    %266 = vector.shape_cast %265 : vector<32x4xf32> to vector<4x8x4xf32>
    %c0_115 = arith.constant 0 : index
    %c0_116 = arith.constant 0 : index
    %267 = vector.load %arg14[%c0_115, %c0_116] : memref<8x4xf32, #tpu.memory_space<vmem>>, vector<8x4xf32>
    %268 = vector.extract_strided_slice %266 {offsets = [0, 0, 0], sizes = [1, 8, 4], strides = [1, 1, 1]} : vector<4x8x4xf32> to vector<1x8x4xf32>
    %269 = vector.shape_cast %268 : vector<1x8x4xf32> to vector<8x4xf32>
    %270 = arith.addf %267, %269 : vector<8x4xf32>
    %c0_117 = arith.constant 0 : index
    %c0_118 = arith.constant 0 : index
    %c0_119 = arith.constant 0 : index
    %271 = vector.load %arg9[%c0_117, %c0_118, %c0_119] : memref<4x8x4xf32, #tpu.memory_space<vmem>>, vector<1x8x4xf32>
    %272 = vector.shape_cast %271 : vector<1x8x4xf32> to vector<8x4xf32>
    %273 = vector.shape_cast %270 : vector<8x4xf32> to vector<1x8x4xf32>
    tpu.vector_store %arg9[%c0_117, %c0_118, %c0_119], %273 {strides = array<i32>} : memref<4x8x4xf32, #tpu.memory_space<vmem>>, vector<1x8x4xf32>,
    %274 = vector.extract_strided_slice %266 {offsets = [1, 0, 0], sizes = [1, 8, 4], strides = [1, 1, 1]} : vector<4x8x4xf32> to vector<1x8x4xf32>
    %275 = vector.shape_cast %274 : vector<1x8x4xf32> to vector<8x4xf32>
    %276 = arith.addf %270, %275 : vector<8x4xf32>
    %c1_120 = arith.constant 1 : index
    %c0_121 = arith.constant 0 : index
    %c0_122 = arith.constant 0 : index
    %277 = vector.load %arg9[%c1_120, %c0_121, %c0_122] : memref<4x8x4xf32, #tpu.memory_space<vmem>>, vector<1x8x4xf32>
    %278 = vector.shape_cast %277 : vector<1x8x4xf32> to vector<8x4xf32>
    %279 = vector.shape_cast %276 : vector<8x4xf32> to vector<1x8x4xf32>
    tpu.vector_store %arg9[%c1_120, %c0_121, %c0_122], %279 {strides = array<i32>} : memref<4x8x4xf32, #tpu.memory_space<vmem>>, vector<1x8x4xf32>,
    %280 = vector.extract_strided_slice %266 {offsets = [2, 0, 0], sizes = [1, 8, 4], strides = [1, 1, 1]} : vector<4x8x4xf32> to vector<1x8x4xf32>
    %281 = vector.shape_cast %280 : vector<1x8x4xf32> to vector<8x4xf32>
    %282 = arith.addf %276, %281 : vector<8x4xf32>
    %c2 = arith.constant 2 : index
    %c0_123 = arith.constant 0 : index
    %c0_124 = arith.constant 0 : index
    %283 = vector.load %arg9[%c2, %c0_123, %c0_124] : memref<4x8x4xf32, #tpu.memory_space<vmem>>, vector<1x8x4xf32>
    %284 = vector.shape_cast %283 : vector<1x8x4xf32> to vector<8x4xf32>
    %285 = vector.shape_cast %282 : vector<8x4xf32> to vector<1x8x4xf32>
    tpu.vector_store %arg9[%c2, %c0_123, %c0_124], %285 {strides = array<i32>} : memref<4x8x4xf32, #tpu.memory_space<vmem>>, vector<1x8x4xf32>,
    %286 = vector.extract_strided_slice %266 {offsets = [3, 0, 0], sizes = [1, 8, 4], strides = [1, 1, 1]} : vector<4x8x4xf32> to vector<1x8x4xf32>
    %287 = vector.shape_cast %286 : vector<1x8x4xf32> to vector<8x4xf32>
    %288 = arith.addf %282, %287 : vector<8x4xf32>
    %c3 = arith.constant 3 : index
    %c0_125 = arith.constant 0 : index
    %c0_126 = arith.constant 0 : index
    %289 = vector.load %arg9[%c3, %c0_125, %c0_126] : memref<4x8x4xf32, #tpu.memory_space<vmem>>, vector<1x8x4xf32>
    %290 = vector.shape_cast %289 : vector<1x8x4xf32> to vector<8x4xf32>
    %291 = vector.shape_cast %288 : vector<8x4xf32> to vector<1x8x4xf32>
    tpu.vector_store %arg9[%c3, %c0_125, %c0_126], %291 {strides = array<i32>} : memref<4x8x4xf32, #tpu.memory_space<vmem>>, vector<1x8x4xf32>,
    %c0_127 = arith.constant 0 : index
    %c0_128 = arith.constant 0 : index
    %292 = vector.load %arg14[%c0_127, %c0_128] : memref<8x4xf32, #tpu.memory_space<vmem>>, vector<8x4xf32>
    tpu.vector_store %arg14[%c0_127, %c0_128], %288 {strides = array<i32>} : memref<8x4xf32, #tpu.memory_space<vmem>>, vector<8x4xf32>,
    return
  }
  func.func @transform_0(%arg0: i32, %arg1: i32) -> (i32, i32, i32) {
    %c0_i32 = arith.constant 0 : i32
    %c0_i32_0 = arith.constant 0 : i32
    return %arg1, %arg0, %c0_i32 : i32, i32, i32
  }
  func.func @transform_1(%arg0: i32, %arg1: i32) -> (i32, i32) {
    %c0_i32 = arith.constant 0 : i32
    %c0_i32_0 = arith.constant 0 : i32
    %c0_i32_1 = arith.constant 0 : i32
    return %c0_i32, %c0_i32_0 : i32, i32
  }
  func.func @transform_2(%arg0: i32, %arg1: i32) -> (i32, i32, i32) {
    %c0_i32 = arith.constant 0 : i32
    %c0_i32_0 = arith.constant 0 : i32
    %c0_i32_1 = arith.constant 0 : i32
    %c0_i32_2 = arith.constant 0 : i32
    return %c0_i32, %c0_i32_0, %c0_i32_1 : i32, i32, i32
  }
  func.func @transform_3(%arg0: i32, %arg1: i32) -> (i32, i32, i32) {
    %c0_i32 = arith.constant 0 : i32
    %c0_i32_0 = arith.constant 0 : i32
    %c0_i32_1 = arith.constant 0 : i32
    %c0_i32_2 = arith.constant 0 : i32
    return %c0_i32, %c0_i32_0, %c0_i32_1 : i32, i32, i32
  }
  func.func @transform_4(%arg0: i32, %arg1: i32) -> (i32, i32, i32) {
    %c0_i32 = arith.constant 0 : i32
    %c0_i32_0 = arith.constant 0 : i32
    %c0_i32_1 = arith.constant 0 : i32
    %c0_i32_2 = arith.constant 0 : i32
    return %c0_i32, %c0_i32_0, %c0_i32_1 : i32, i32, i32
  }
  func.func @transform_5(%arg0: i32, %arg1: i32) -> (i32, i32) {
    %c0_i32 = arith.constant 0 : i32
    %c0_i32_0 = arith.constant 0 : i32
    %c0_i32_1 = arith.constant 0 : i32
    return %c0_i32, %c0_i32_0 : i32, i32
  }
  func.func @transform_6(%arg0: i32, %arg1: i32) -> (i32, i32) {
    %c0_i32 = arith.constant 0 : i32
    %c0_i32_0 = arith.constant 0 : i32
    %c0_i32_1 = arith.constant 0 : i32
    return %c0_i32, %c0_i32_0 : i32, i32
  }
  func.func @transform_7(%arg0: i32, %arg1: i32) -> (i32, i32, i32) {
    %c0_i32 = arith.constant 0 : i32
    %c0_i32_0 = arith.constant 0 : i32
    return %arg1, %arg0, %c0_i32 : i32, i32, i32
  }
}

</mosaic_0001>

<llo_original>
// kernel: mymodel_forward.1
$region0: #{mymodel_forward.1}
  #allocation0 [shape = 'u32[]', space=smem, size = 0x4, offset = 0x4, fixed_abs, tag = 'smem constant byte address 0x4 - core index']
  #allocation1 [shape = 'u32[144,128]{1,0:T(1,128)}', space=vmem, size = 0x12000, scoped, tag = 'internal scratch']
  #allocation2 [shape = 'f32[4,8,32]{2,1,0:T(8,128)}', space=vmem, size = 0x4000, scoped, tag = 'scratch operand']
  #allocation3 [shape = 'f32[4,8,128]{2,1,0:T(8,128)}', space=vmem, size = 0x4000, scoped, tag = 'scratch operand']
  #allocation4 [shape = 'f32[2,8,32]{2,1,0:T(8,128)}', space=vmem, size = 0x2000, scoped, tag = 'scratch operand']
  #allocation5 [shape = 'f32[2,8,32]{2,1,0:T(8,128)}', space=vmem, size = 0x2000, scoped, tag = 'scratch operand']
  #allocation6 [shape = 'f32[8,4]{1,0:T(8,128)}', space=vmem, size = 0x1000, scoped, tag = 'scratch operand']
  %s0 = inlined_call_operand.vmem [shape: f32[8,8,4], index: 0, kind: input, shape index: {}]
  %s1 = inlined_call_operand.vmem [shape: bf16[4,128], index: 1, kind: input, shape index: {}]
  %s2 = inlined_call_operand.vmem [shape: bf16[1,32,128], index: 2, kind: input, shape index: {}]
  %s3 = inlined_call_operand.vmem [shape: bf16[2,32,128], index: 3, kind: input, shape index: {}]
  %s4 = inlined_call_operand.vmem [shape: f32[2,1,128], index: 4, kind: input, shape index: {}]
  %s5 = inlined_call_operand.vmem [shape: bf16[32,4], index: 5, kind: input, shape index: {}]
  %s6 = inlined_call_operand.vmem [shape: f32[1,4], index: 6, kind: input, shape index: {}]
  %s7 = inlined_call_operand.vmem [shape: f32[8,8,4], index: 7, kind: output, shape index: {}]
  %s8 = sld [smem:[#allocation0]]
  $region65: #{mymodel_forward.1} parent=0
    _
  %s10 = ssub.s32 1, %s8
  %s11 = scalar_select 0, %s10, %s8
  loop: start=0, step=1, limit=4
  $region2: #{mymodel_forward.1} parent=0 // loop_pre_header
    _
  $region3: #{mymodel_forward.1} parent=0 // loop_header
    %s13 = sphi 0, %s17
    %p14 = scmp.ge.s32.totalorder %s13, 4
    %s20 = sphi 0, %s32
    %s21 = sphi 0, %s28
    %s22 = sphi 0, %s20
    %s23 = sphi 0, %s21
    %s24 = sphi 0, %s22
    %s25 = sphi 0, %s23
    %s37 = sphi 0, %s39
    %s40 = sphi 0, %s37
    %s41 = sphi 0, %s40
    %s57 = sphi 0, %s41
    %s61 = sphi 0, %s61
    %s63 = sphi 0, %s61
    %s64 = sphi 0, %s63
    %s78 = sphi 0, %s64
    %s82 = sphi 0, %s82
    %s84 = sphi 0, %s82
    %s85 = sphi 0, %s84
    %s99 = sphi 0, %s85
    %s103 = sphi 0, %s103
    %s105 = sphi 0, %s103
    %s106 = sphi 0, %s105
    %s120 = sphi 0, %s106
    %s124 = sphi 0, %s124
    %s126 = sphi 0, %s124
    %s127 = sphi 0, %s126
    %s141 = sphi 0, %s127
    %s145 = sphi 0, %s145
    %s147 = sphi 0, %s145
    %s148 = sphi 0, %s147
    %s162 = sphi 0, %s148
    %s166 = sphi 0, %s166
    %s168 = sphi 0, %s166
    %s169 = sphi 0, %s168
    %s183 = sphi 0, %s169
    %s191 = sphi 0, %s193
    %s194 = sphi 0, %s191
    %s195 = sphi 0, %s194
    %s211 = sphi 0, %s195
  $region4: #{mymodel_forward.1} parent=0 // loop_header_branch
    %16 = sbr.rel (%p14) target = $region8
  $region5: #{mymodel_forward.1} parent=0 // loop_body
    %s18 = ssub.s32 %s13, 1
    %s19 = ssub.s32 %s13, 2
    %s26 = sadd.s32 1, %s21
    %p27 = scmp.ge.s32.totalorder %s26, 2
    %s28 = scalar_select %p27, 0, %s26
    %s29 = sadd.s32 1, %s20
    %s30 = scalar_select %p27, %s29, %s20
    %p31 = scmp.ge.s32.totalorder %s30, 1
    %s32 = scalar_select %p31, 0, %s30
    %s33 = ssub.s32 %s21, %s28
    %s34 = ssub.s32 %s20, %s32
    %s35 = sor.u32 %s33, %s34
    %p36 = scmp.eq.s32.totalorder %s35, 0
    %s38 = sadd.s32 %s37, 1
    %s39 = scalar_select %p36, %s37, %s38
    %p42 = pneg %p36
    %p43 = scmp.eq.s32.totalorder %s13, 1
    %p44 = por %p42, %p43
    %p45 = scmp.ne.s32.totalorder %s37, %s40
    %p46 = scmp.eq.s32.totalorder %s13, 0
    %p47 = por %p45, %p46
    %p48 = scmp.ne.s32.totalorder %s37, %s40
    %p49 = scmp.eq.s32.totalorder %s18, 1
    %p50 = por %p48, %p49
    %p51 = scmp.ne.s32.totalorder %s40, %s41
    %p52 = scmp.eq.s32.totalorder %s18, 0
    %p53 = por %p51, %p52
    %p54 = scmp.ne.s32.totalorder %s40, %s41
    %p55 = scmp.eq.s32.totalorder %s19, 1
    %p56 = por %p54, %p55
    %p58 = scmp.ne.s32.totalorder %s41, %s57
    %p59 = scmp.eq.s32.totalorder %s19, 0
    %p60 = por %p58, %p59
    %s62 = sadd.s32 %s61, 1
    %p65 = scmp.eq.s32.totalorder %s13, 1
    %p66 = scmp.ne.s32.totalorder %s61, %s63
    %p67 = scmp.eq.s32.totalorder %s13, 0
    %p68 = por %p66, %p67
    %p69 = scmp.ne.s32.totalorder %s61, %s63
    %p70 = scmp.eq.s32.totalorder %s18, 1
    %p71 = por %p69, %p70
    %p72 = scmp.ne.s32.totalorder %s63, %s64
    %p73 = scmp.eq.s32.totalorder %s18, 0
    %p74 = por %p72, %p73
    %p75 = scmp.ne.s32.totalorder %s63, %s64
    %p76 = scmp.eq.s32.totalorder %s19, 1
    %p77 = por %p75, %p76
    %p79 = scmp.ne.s32.totalorder %s64, %s78
    %p80 = scmp.eq.s32.totalorder %s19, 0
    %p81 = por %p79, %p80
    %s83 = sadd.s32 %s82, 1
    %p86 = scmp.eq.s32.totalorder %s13, 1
    %p87 = scmp.ne.s32.totalorder %s82, %s84
    %p88 = scmp.eq.s32.totalorder %s13, 0
    %p89 = por %p87, %p88
    %p90 = scmp.ne.s32.totalorder %s82, %s84
    %p91 = scmp.eq.s32.totalorder %s18, 1
    %p92 = por %p90, %p91
    %p93 = scmp.ne.s32.totalorder %s84, %s85
    %p94 = scmp.eq.s32.totalorder %s18, 0
    %p95 = por %p93, %p94
    %p96 = scmp.ne.s32.totalorder %s84, %s85
    %p97 = scmp.eq.s32.totalorder %s19, 1
    %p98 = por %p96, %p97
    %p100 = scmp.ne.s32.totalorder %s85, %s99
    %p101 = scmp.eq.s32.totalorder %s19, 0
    %p102 = por %p100, %p101
    %s104 = sadd.s32 %s103, 1
    %p107 = scmp.eq.s32.totalorder %s13, 1
    %p108 = scmp.ne.s32.totalorder %s103, %s105
    %p109 = scmp.eq.s32.totalorder %s13, 0
    %p110 = por %p108, %p109
    %p111 = scmp.ne.s32.totalorder %s103, %s105
    %p112 = scmp.eq.s32.totalorder %s18, 1
    %p113 = por %p111, %p112
    %p114 = scmp.ne.s32.totalorder %s105, %s106
    %p115 = scmp.eq.s32.totalorder %s18, 0
    %p116 = por %p114, %p115
    %p117 = scmp.ne.s32.totalorder %s105, %s106
    %p118 = scmp.eq.s32.totalorder %s19, 1
    %p119 = por %p117, %p118
    %p121 = scmp.ne.s32.totalorder %s106, %s120
    %p122 = scmp.eq.s32.totalorder %s19, 0
    %p123 = por %p121, %p122
    %s125 = sadd.s32 %s124, 1
    %p128 = scmp.eq.s32.totalorder %s13, 1
    %p129 = scmp.ne.s32.totalorder %s124, %s126
    %p130 = scmp.eq.s32.totalorder %s13, 0
    %p131 = por %p129, %p130
    %p132 = scmp.ne.s32.totalorder %s124, %s126
    %p133 = scmp.eq.s32.totalorder %s18, 1
    %p134 = por %p132, %p133
    %p135 = scmp.ne.s32.totalorder %s126, %s127
    %p136 = scmp.eq.s32.totalorder %s18, 0
    %p137 = por %p135, %p136
    %p138 = scmp.ne.s32.totalorder %s126, %s127
    %p139 = scmp.eq.s32.totalorder %s19, 1
    %p140 = por %p138, %p139
    %p142 = scmp.ne.s32.totalorder %s127, %s141
    %p143 = scmp.eq.s32.totalorder %s19, 0
    %p144 = por %p142, %p143
    %s146 = sadd.s32 %s145, 1
    %p149 = scmp.eq.s32.totalorder %s13, 1
    %p150 = scmp.ne.s32.totalorder %s145, %s147
    %p151 = scmp.eq.s32.totalorder %s13, 0
    %p152 = por %p150, %p151
    %p153 = scmp.ne.s32.totalorder %s145, %s147
    %p154 = scmp.eq.s32.totalorder %s18, 1
    %p155 = por %p153, %p154
    %p156 = scmp.ne.s32.totalorder %s147, %s148
    %p157 = scmp.eq.s32.totalorder %s18, 0
    %p158 = por %p156, %p157
    %p159 = scmp.ne.s32.totalorder %s147, %s148
    %p160 = scmp.eq.s32.totalorder %s19, 1
    %p161 = por %p159, %p160
    %p163 = scmp.ne.s32.totalorder %s148, %s162
    %p164 = scmp.eq.s32.totalorder %s19, 0
    %p165 = por %p163, %p164
    %s167 = sadd.s32 %s166, 1
    %p170 = scmp.eq.s32.totalorder %s13, 1
    %p171 = scmp.ne.s32.totalorder %s166, %s168
    %p172 = scmp.eq.s32.totalorder %s13, 0
    %p173 = por %p171, %p172
    %p174 = scmp.ne.s32.totalorder %s166, %s168
    %p175 = scmp.eq.s32.totalorder %s18, 1
    %p176 = por %p174, %p175
    %p177 = scmp.ne.s32.totalorder %s168, %s169
    %p178 = scmp.eq.s32.totalorder %s18, 0
    %p179 = por %p177, %p178
    %p180 = scmp.ne.s32.totalorder %s168, %s169
    %p181 = scmp.eq.s32.totalorder %s19, 1
    %p182 = por %p180, %p181
    %p184 = scmp.ne.s32.totalorder %s169, %s183
    %p185 = scmp.eq.s32.totalorder %s19, 0
    %p186 = por %p184, %p185
    %s187 = ssub.s32 %s21, %s28
    %s188 = ssub.s32 %s20, %s32
    %s189 = sor.u32 %s187, %s188
    %p190 = scmp.eq.s32.totalorder %s189, 0
    %s192 = sadd.s32 %s191, 1
    %s193 = scalar_select %p190, %s191, %s192
    %p196 = pneg %p190
    %p197 = scmp.eq.s32.totalorder %s13, 1
    %p198 = por %p196, %p197
    %p199 = scmp.ne.s32.totalorder %s191, %s194
    %p200 = scmp.eq.s32.totalorder %s13, 0
    %p201 = por %p199, %p200
    %p202 = scmp.ne.s32.totalorder %s191, %s194
    %p203 = scmp.eq.s32.totalorder %s18, 1
    %p204 = por %p202, %p203
    %p205 = scmp.ne.s32.totalorder %s194, %s195
    %p206 = scmp.eq.s32.totalorder %s18, 0
    %p207 = por %p205, %p206
    %p208 = scmp.ne.s32.totalorder %s194, %s195
    %p209 = scmp.eq.s32.totalorder %s19, 1
    %p210 = por %p208, %p209
    %p212 = scmp.ne.s32.totalorder %s195, %s211
    %p213 = scmp.eq.s32.totalorder %s19, 0
    %p214 = por %p212, %p213
    %p215 = scmp.le.s32.totalorder 1, %s13
    %p216 = scmp.lt.s32.totalorder %s13, 3
    %p217 = pnand %p215, %p216
    %p218 = pneg %p217
    // Predicated region
    $region9: #{mymodel_forward.1} parent=5 // pred_check
      _
    $region10: #{mymodel_forward.1} parent=5 // pred_check_branch
      %220 = sbr.rel (%p217) target = $region12
    $region11: #{mymodel_forward.1} parent=5 // pred_region
      %s221 = ssub.s32 %s13, 1
      // Predicated region
      $region13: #{mymodel_forward.1} parent=11 // pred_check
        %p222 = pneg %p74
      $region14: #{mymodel_forward.1} parent=11 // pred_check_branch
        %224 = sbr.rel (%p222) target = $region16
      $region15: #{mymodel_forward.1} parent=11 // pred_region
        _
      $region16: #{mymodel_forward.1} parent=11 // pred_fallthru
        _
      // Predicated region
      $region17: #{mymodel_forward.1} parent=11 // pred_check
        %p225 = pneg %p95
      $region18: #{mymodel_forward.1} parent=11 // pred_check_branch
        %227 = sbr.rel (%p225) target = $region20
      $region19: #{mymodel_forward.1} parent=11 // pred_region
        _
      $region20: #{mymodel_forward.1} parent=11 // pred_fallthru
        _
      // Predicated region
      $region21: #{mymodel_forward.1} parent=11 // pred_check
        %p228 = pneg %p116
      $region22: #{mymodel_forward.1} parent=11 // pred_check_branch
        %230 = sbr.rel (%p228) target = $region24
      $region23: #{mymodel_forward.1} parent=11 // pred_region
        _
      $region24: #{mymodel_forward.1} parent=11 // pred_fallthru
        _
      // Predicated region
      $region25: #{mymodel_forward.1} parent=11 // pred_check
        %p231 = pneg %p137
      $region26: #{mymodel_forward.1} parent=11 // pred_check_branch
        %233 = sbr.rel (%p231) target = $region28
      $region27: #{mymodel_forward.1} parent=11 // pred_region
        _
      $region28: #{mymodel_forward.1} parent=11 // pred_fallthru
        _
      // Predicated region
      $region29: #{mymodel_forward.1} parent=11 // pred_check
        %p234 = pneg %p158
      $region30: #{mymodel_forward.1} parent=11 // pred_check_branch
        %236 = sbr.rel (%p234) target = $region32
      $region31: #{mymodel_forward.1} parent=11 // pred_region
        _
      $region32: #{mymodel_forward.1} parent=11 // pred_fallthru
        _
      // Predicated region
      $region33: #{mymodel_forward.1} parent=11 // pred_check
        %p237 = pneg %p179
      $region34: #{mymodel_forward.1} parent=11 // pred_check_branch
        %239 = sbr.rel (%p237) target = $region36
      $region35: #{mymodel_forward.1} parent=11 // pred_region
        _
      $region36: #{mymodel_forward.1} parent=11 // pred_fallthru
        _
    $region12: #{mymodel_forward.1} parent=5 // pred_fallthru
      _
    %p240 = scmp.lt.s32.totalorder %s13, 2
    // Predicated region
    $region37: #{mymodel_forward.1} parent=5 // pred_check
      %p241 = pneg %p240
    $region38: #{mymodel_forward.1} parent=5 // pred_check_branch
      %243 = sbr.rel (%p241) target = $region40
    $region39: #{mymodel_forward.1} parent=5 // pred_region
      // Predicated region
      $region41: #{mymodel_forward.1} parent=39 // pred_check
        %p244 = pneg %p47
      $region42: #{mymodel_forward.1} parent=39 // pred_check_branch
        %246 = sbr.rel (%p244) target = $region44
      $region43: #{mymodel_forward.1} parent=39 // pred_region
        %s247 = smul.u32 4, %s21
        %p248 = scmp.lt.s32.totalorder %s247, 7
        %s249 = scalar_select %p248, %s247, 7
        %p250 = scmp.lt.s32.totalorder %s20, 0
        %s251 = scalar_select %p250, %s20, 0
        %s252 = sadd.s32 %s251, %s249
        %s253 = smul.addr %s252, 8
        %s254 = scalar_lea.vmem %s0, %s253
        %s255 = smul.u32 4, %s21
      $region44: #{mymodel_forward.1} parent=39 // pred_fallthru
        _
    $region40: #{mymodel_forward.1} parent=5 // pred_fallthru
      _
    %p256 = scmp.le.s32.totalorder 1, %s13
    %p257 = scmp.lt.s32.totalorder %s13, 3
    %p258 = pnand %p256, %p257
    %p259 = pneg %p258
    // Predicated region
    $region45: #{mymodel_forward.1} parent=5 // pred_check
      _
    $region46: #{mymodel_forward.1} parent=5 // pred_check_branch
      %261 = sbr.rel (%p258) target = $region48
    $region47: #{mymodel_forward.1} parent=5 // pred_region
      %s262 = ssub.s32 %s13, 1
      %s263 = smul.u32 4, %s23
      %p264 = scmp.lt.s32.totalorder %s263, 7
      %s265 = scalar_select %p264, %s263, 7
      %p266 = scmp.lt.s32.totalorder %s22, 0
      %s267 = scalar_select %p266, %s22, 0
      %s268 = sadd.s32 %s267, %s265
      %s269 = smul.addr %s268, 8
      %s270 = scalar_lea.vmem %s0, %s269
      %p271 = pneg %p53
      %p272 = pneg %p50
      %p273 = pneg %p74
      %p274 = pneg %p71
      %p275 = pneg %p95
      %p276 = pneg %p92
      %p277 = pneg %p116
      %p278 = pneg %p113
      %p279 = pneg %p137
      %p280 = pneg %p134
      %p281 = pneg %p158
      %p282 = pneg %p155
      %p283 = pneg %p179
      %p284 = pneg %p176
      %p285 = pneg %p207
      %p286 = pneg %p204
      %s287 = smul.u32 4, %s23
      %p288 = scmp.lt.s32.totalorder %s287, 7
      %s289 = scalar_select %p288, %s287, 7
      %p290 = scmp.lt.s32.totalorder %s22, 0
      %s291 = scalar_select %p290, %s22, 0
      %s292 = sadd.s32 %s291, %s289
      %s293 = smul.addr %s292, 8
      %s294 = scalar_lea.vmem %s7, %s293
      %s295 = smul.u32 4, %s23
      %p296 = scmp.lt.s32.totalorder %s295, 7
      %s297 = scalar_select %p296, %s295, 7
      %p298 = scmp.lt.s32.totalorder %s22, 0
      %s299 = scalar_select %p298, %s22, 0
      %s300 = sadd.s32 %s299, %s297
      %s301 = smul.addr %s300, 8
      %s302 = scalar_lea.vmem %s0, %s301
      %s303 = smul.u32 4, %s23
      %s304 = smul.u32 4, %s23
      %p305 = scmp.lt.s32.totalorder %s304, 7
      %s306 = scalar_select %p305, %s304, 7
      %p307 = scmp.lt.s32.totalorder %s22, 0
      %s308 = scalar_select %p307, %s22, 0
      %s309 = sadd.s32 %s308, %s306
      %s310 = smul.addr %s309, 8
      %s311 = scalar_lea.vmem %s7, %s310
      %s312 = smul.u32 4, %s23
      %p314 = scmp.eq.s32.totalorder %s23, 0
      // Predicated region
      $region49: #{mymodel_forward.1} parent=47 // pred_check
        %p315 = pneg %p314
      $region50: #{mymodel_forward.1} parent=47 // pred_check_branch
        %317 = sbr.rel (%p315) target = $region52
      $region51: #{mymodel_forward.1} parent=47 // pred_region
        %vm318 = vcmask 261120
        %319 = vst.msk [vmem:[#allocation4] sm:$0xff] %vm318, 0.0
        %320 = vst.msk [vmem:[#allocation4 + $0x8] sm:$0xff] %vm318, 0.0
        %321 = vst.msk [vmem:[#allocation5] sm:$0xff] %vm318, 0.0
        %322 = vst.msk [vmem:[#allocation5 + $0x8] sm:$0xff] %vm318, 0.0
        %vm323 = vcmask 31744
        %324 = vst.msk [vmem:[#allocation6] sm:$0xff] %vm323, 0.0
      $region52: #{mymodel_forward.1} parent=47 // pred_fallthru
        _
      %v325 = vld [vmem:[%s302] sm:$0xff]
      %v326 = vld [vmem:[%s302 + $0x8] sm:$0xff]
      %v327 = vld [vmem:[%s302 + $0x10] sm:$0xff]
      %v328 = vld [vmem:[%s302 + $0x18] sm:$0xff]
      %v329 = vpack.c.bf16 %v326, %v325
      %v330 = vpack.c.bf16 %v328, %v327
      %v331 = vld [vmem:[%s1] sm:$0x3]
      %v332 = vld [vmem:[%s4] sm:$0x1]
      %v334 = vlaneseq
      %v335 = vshrl.u32 %v334, 7
      %v336 = vsub.s32 0, %v335
      %v337 = vrot.slane %v332, %v336
      %vm339 = vcmask 31744
      %v341 = vsel %vm339, %v329, 0
      %v344 = vsel %vm339, %v330, 0
      %vm346 = vcmask 1041408
      %v348 = vsel %vm346, %v331, 0
      %350 = vmatprep.subr.bf16.mxu0 0
      %351 = vmatpush1.bf16.msra.mxu0 %v348
      %352 = vmatprep.subr.bf16.mxu0 0
      %353 = vmatpush1.bf16.msra.mxu0 0
      %354 = vmatprep.subr.bf16.mxu0 0
      %355 = vmatpush1.bf16.msra.mxu0 0
      %356 = vmatprep.subr.bf16.mxu0 0
      %357 = vmatpush1.bf16.msra.mxu0 0
      %358 = vmatprep.subr.bf16.mxu0 0
      %359 = vmatpush1.bf16.msra.mxu0 0
      %360 = vmatprep.subr.bf16.mxu0 0
      %361 = vmatpush1.bf16.msra.mxu0 0
      %362 = vmatprep.subr.bf16.mxu0 0
      %363 = vmatpush1.bf16.msra.mxu0 0
      %364 = vmatprep.subr.bf16.mxu0 0
      %365 = vmatpush1.bf16.msra.mxu0 0
      %366 = vmatprep.subr.bf16.mxu0 0
      %367 = vmatpush1.bf16.msra.mxu0 0
      %368 = vmatprep.subr.bf16.mxu0 0
      %369 = vmatpush1.bf16.msra.mxu0 0
      %370 = vmatprep.subr.bf16.mxu0 0
      %371 = vmatpush1.bf16.msra.mxu0 0
      %372 = vmatprep.subr.bf16.mxu0 0
      %373 = vmatpush1.bf16.msra.mxu0 0
      %374 = vmatprep.subr.bf16.mxu0 0
      %375 = vmatpush1.bf16.msra.mxu0 0
      %376 = vmatprep.subr.bf16.mxu0 0
      %377 = vmatpush1.bf16.msra.mxu0 0
      %378 = vmatprep.subr.bf16.mxu0 0
      %379 = vmatpush1.bf16.msra.mxu0 0
      %380 = vmatprep.subr.bf16.mxu0 0
      %381 = vmatpush1.bf16.msra.mxu0 0
      %382 = vmatprep.mubr.bf16.mxu0 0
      %383 = vmatmul.mubr.bf16.gmra.mrb[0].mxu0 %v341
      %v384 = vpop.f32.mrb[0].mxu0
      %v385 = vadd.f32 %v337, %v384
      %v386 = vpop.f32.mrb[0].mxu0
      %v387 = vpop.f32.mrb[0].mxu0
      %v388 = vadd.f32 %v337, %v387
      %v389 = vpop.f32.mrb[0].mxu0
      %390 = vmatprep.mubr.bf16.mxu0 0
      %391 = vmatmul.mubr.bf16.gmra.mrb[0].mxu0 %v344
      %v392 = vpop.f32.mrb[0].mxu0
      %v393 = vadd.f32 %v337, %v392
      %v394 = vpop.f32.mrb[0].mxu0
      %v395 = vpop.f32.mrb[0].mxu0
      %v396 = vadd.f32 %v337, %v395
      %v397 = vpop.f32.mrb[0].mxu0
      %398 = vdwg.mxu0
      %399 = vst [vmem:[#allocation3] sm:$0xff] %v385
      %400 = vst [vmem:[#allocation3 + $0x8] sm:$0xff] %v388
      %401 = vst [vmem:[#allocation3 + $0x10] sm:$0xff] %v393
      %402 = vst [vmem:[#allocation3 + $0x18] sm:$0xff] %v396
      %v403 = vld [vmem:[%s3] sm:$0xf]
      %v404 = vld [vmem:[%s3 + $0x4] sm:$0xf]
      %v405 = vld [vmem:[%s3 + $0x8] sm:$0xf]
      %v406 = vld [vmem:[%s3 + $0xc] sm:$0xf]
      %v407 = vld [vmem:[#allocation4] sm:$0xff]
      %v408 = vld [vmem:[#allocation5] sm:$0xff]
      %v409 = vld [vmem:[#allocation3] sm:$0xff]
      %v410 = vpack.c.bf16 %v407, %v407
      %v415 = vunpack.c.l.b16 %v403
      %v416 = vunpack.c.l.b16 %v404
      %v417 = vunpack.c.l.b16 %v405
      %v418 = vunpack.c.l.b16 %v406
      %v419 = vpack.c.b16 %v416, %v415
      %v420 = vpack.c.b16 %v418, %v417
      %vm423 = vcmask 261120
      %v425 = vsel %vm423, %v410, 0
      %427 = vmatprep.subr.bf16.mxu0 0
      %428 = vmatpush1.bf16.msra.mxu0 %v419
      %429 = vmatprep.subr.bf16.mxu0 0
      %430 = vmatpush1.bf16.msra.mxu0 %v420
      %431 = vmatprep.subr.bf16.mxu0 0
      %432 = vmatpush1.bf16.msra.mxu0 0
      %433 = vmatprep.subr.bf16.mxu0 0
      %434 = vmatpush1.bf16.msra.mxu0 0
      %435 = vmatprep.subr.bf16.mxu0 0
      %436 = vmatpush1.bf16.msra.mxu0 0
      %437 = vmatprep.subr.bf16.mxu0 0
      %438 = vmatpush1.bf16.msra.mxu0 0
      %439 = vmatprep.subr.bf16.mxu0 0
      %440 = vmatpush1.bf16.msra.mxu0 0
      %441 = vmatprep.subr.bf16.mxu0 0
      %442 = vmatpush1.bf16.msra.mxu0 0
      %443 = vmatprep.subr.bf16.mxu0 0
      %444 = vmatpush1.bf16.msra.mxu0 0
      %445 = vmatprep.subr.bf16.mxu0 0
      %446 = vmatpush1.bf16.msra.mxu0 0
      %447 = vmatprep.subr.bf16.mxu0 0
      %448 = vmatpush1.bf16.msra.mxu0 0
      %449 = vmatprep.subr.bf16.mxu0 0
      %450 = vmatpush1.bf16.msra.mxu0 0
      %451 = vmatprep.subr.bf16.mxu0 0
      %452 = vmatpush1.bf16.msra.mxu0 0
      %453 = vmatprep.subr.bf16.mxu0 0
      %454 = vmatpush1.bf16.msra.mxu0 0
      %455 = vmatprep.subr.bf16.mxu0 0
      %456 = vmatpush1.bf16.msra.mxu0 0
      %457 = vmatprep.subr.bf16.mxu0 0
      %458 = vmatpush1.bf16.msra.mxu0 0
      %459 = vmatprep.mubr.bf16.mxu0 0
      %460 = vmatmul.mubr.bf16.gmra.mrb[0].mxu0 %v425
      %v461 = vpop.f32.mrb[0].mxu0
      %v462 = vadd.f32 0.0, %v461
      %v463 = vpop.f32.mrb[0].mxu0
      %v464 = vpop.f32.mrb[0].mxu0
      %v465 = vpop.f32.mrb[0].mxu0
      %466 = vdwg.mxu0
      %v467 = vadd.f32 %v409, %v462
      %v468 = vxor.u32 %v467, 2147483648
      %v469 = vmul.f32 %v468, 1.442695
      %v470 = vpow.pop %v469
      %v471 = vadd.f32 %v470, 1.0
      %v472 = vrcp.pop %v471
      %v473 = vmul.f32 1.0, %v472
      %v474 = vtanh.pop %v467
      %476 = vrot.lane.b32.xlu0 %v408, 32
      %v477 = vpop.permute.xlu0 %476
      %v479 = vmul.f32 %v473, %v477
      %481 = vrot.lane.b32.xlu0 %v474, 32
      %v482 = vpop.permute.xlu0 %481
      %v484 = vmul.f32 %v473, %v482
      %486 = vrot.lane.b32.xlu0 %v484, 32
      %v487 = vpop.permute.xlu0 %486
      %v489 = vadd.f32 %v479, %v487
      %v490 = vtanh.pop %v489
      %492 = vrot.lane.b32.xlu0 %v490, 32
      %v493 = vpop.permute.xlu0 %492
      %v495 = vmul.f32 %v473, %v493
      %497 = vrot.lane.b32.xlu0 %v495, 64
      %v498 = vpop.permute.xlu0 %497
      %500 = vst.msk [vmem:[#allocation2] sm:$0xff] %vm423, %v498
      %s501 = scalar_lea.vmem [#allocation3], 8
      %v502 = vld [vmem:[%s501] sm:$0xff]
      %v503 = vpack.c.bf16 %v495, %v495
      %505 = vrot.lane.b32.xlu0 %v503, 64
      %v506 = vpop.permute.xlu0 %505
      %v508 = vsel %vm423, %v506, 0
      %510 = vmatprep.subr.bf16.mxu0 0
      %511 = vmatpush1.bf16.msra.mxu0 %v419
      %512 = vmatprep.subr.bf16.mxu0 0
      %513 = vmatpush1.bf16.msra.mxu0 %v420
      %514 = vmatprep.subr.bf16.mxu0 0
      %515 = vmatpush1.bf16.msra.mxu0 0
      %516 = vmatprep.subr.bf16.mxu0 0
      %517 = vmatpush1.bf16.msra.mxu0 0
      %518 = vmatprep.subr.bf16.mxu0 0
      %519 = vmatpush1.bf16.msra.mxu0 0
      %520 = vmatprep.subr.bf16.mxu0 0
      %521 = vmatpush1.bf16.msra.mxu0 0
      %522 = vmatprep.subr.bf16.mxu0 0
      %523 = vmatpush1.bf16.msra.mxu0 0
      %524 = vmatprep.subr.bf16.mxu0 0
      %525 = vmatpush1.bf16.msra.mxu0 0
      %526 = vmatprep.subr.bf16.mxu0 0
      %527 = vmatpush1.bf16.msra.mxu0 0
      %528 = vmatprep.subr.bf16.mxu0 0
      %529 = vmatpush1.bf16.msra.mxu0 0
      %530 = vmatprep.subr.bf16.mxu0 0
      %531 = vmatpush1.bf16.msra.mxu0 0
      %532 = vmatprep.subr.bf16.mxu0 0
      %533 = vmatpush1.bf16.msra.mxu0 0
      %534 = vmatprep.subr.bf16.mxu0 0
      %535 = vmatpush1.bf16.msra.mxu0 0
      %536 = vmatprep.subr.bf16.mxu0 0
      %537 = vmatpush1.bf16.msra.mxu0 0
      %538 = vmatprep.subr.bf16.mxu0 0
      %539 = vmatpush1.bf16.msra.mxu0 0
      %540 = vmatprep.subr.bf16.mxu0 0
      %541 = vmatpush1.bf16.msra.mxu0 0
      %542 = vmatprep.mubr.bf16.mxu0 0
      %543 = vmatmul.mubr.bf16.gmra.mrb[0].mxu0 %v508
      %v544 = vpop.f32.mrb[0].mxu0
      %v545 = vadd.f32 0.0, %v544
      %v546 = vpop.f32.mrb[0].mxu0
      %v547 = vpop.f32.mrb[0].mxu0
      %v548 = vpop.f32.mrb[0].mxu0
      %549 = vdwg.mxu0
      %v550 = vadd.f32 %v502, %v545
      %v551 = vxor.u32 %v550, 2147483648
      %v552 = vmul.f32 %v551, 1.442695
      %v553 = vpow.pop %v552
      %v554 = vadd.f32 %v553, 1.0
      %v555 = vrcp.pop %v554
      %v556 = vmul.f32 1.0, %v555
      %v557 = vtanh.pop %v550
      %v558 = vmul.f32 %v556, %v489
      %560 = vrot.lane.b32.xlu0 %v557, 32
      %v561 = vpop.permute.xlu0 %560
      %v563 = vmul.f32 %v556, %v561
      %565 = vrot.lane.b32.xlu0 %v563, 32
      %v566 = vpop.permute.xlu0 %565
      %v568 = vadd.f32 %v558, %v566
      %v569 = vtanh.pop %v568
      %571 = vrot.lane.b32.xlu0 %v569, 32
      %v572 = vpop.permute.xlu0 %571
      %v574 = vmul.f32 %v556, %v572
      %576 = vrot.lane.b32.xlu0 %v574, 64
      %v577 = vpop.permute.xlu0 %576
      %s579 = scalar_lea.vmem [#allocation2], 8
      %580 = vst.msk [vmem:[%s579] sm:$0xff] %vm423, %v577
      %s581 = scalar_lea.vmem [#allocation3], 16
      %v582 = vld [vmem:[%s581] sm:$0xff]
      %v583 = vpack.c.bf16 %v574, %v574
      %585 = vrot.lane.b32.xlu0 %v583, 64
      %v586 = vpop.permute.xlu0 %585
      %v588 = vsel %vm423, %v586, 0
      %590 = vmatprep.subr.bf16.mxu0 0
      %591 = vmatpush1.bf16.msra.mxu0 %v419
      %592 = vmatprep.subr.bf16.mxu0 0
      %593 = vmatpush1.bf16.msra.mxu0 %v420
      %594 = vmatprep.subr.bf16.mxu0 0
      %595 = vmatpush1.bf16.msra.mxu0 0
      %596 = vmatprep.subr.bf16.mxu0 0
      %597 = vmatpush1.bf16.msra.mxu0 0
      %598 = vmatprep.subr.bf16.mxu0 0
      %599 = vmatpush1.bf16.msra.mxu0 0
      %600 = vmatprep.subr.bf16.mxu0 0
      %601 = vmatpush1.bf16.msra.mxu0 0
      %602 = vmatprep.subr.bf16.mxu0 0
      %603 = vmatpush1.bf16.msra.mxu0 0
      %604 = vmatprep.subr.bf16.mxu0 0
      %605 = vmatpush1.bf16.msra.mxu0 0
      %606 = vmatprep.subr.bf16.mxu0 0
      %607 = vmatpush1.bf16.msra.mxu0 0
      %608 = vmatprep.subr.bf16.mxu0 0
      %609 = vmatpush1.bf16.msra.mxu0 0
      %610 = vmatprep.subr.bf16.mxu0 0
      %611 = vmatpush1.bf16.msra.mxu0 0
      %612 = vmatprep.subr.bf16.mxu0 0
      %613 = vmatpush1.bf16.msra.mxu0 0
      %614 = vmatprep.subr.bf16.mxu0 0
      %615 = vmatpush1.bf16.msra.mxu0 0
      %616 = vmatprep.subr.bf16.mxu0 0
      %617 = vmatpush1.bf16.msra.mxu0 0
      %618 = vmatprep.subr.bf16.mxu0 0
      %619 = vmatpush1.bf16.msra.mxu0 0
      %620 = vmatprep.subr.bf16.mxu0 0
      %621 = vmatpush1.bf16.msra.mxu0 0
      %622 = vmatprep.mubr.bf16.mxu0 0
      %623 = vmatmul.mubr.bf16.gmra.mrb[0].mxu0 %v588
      %v624 = vpop.f32.mrb[0].mxu0
      %v625 = vadd.f32 0.0, %v624
      %v626 = vpop.f32.mrb[0].mxu0
      %v627 = vpop.f32.mrb[0].mxu0
      %v628 = vpop.f32.mrb[0].mxu0
      %629 = vdwg.mxu0
      %v630 = vadd.f32 %v582, %v625
      %v631 = vxor.u32 %v630, 2147483648
      %v632 = vmul.f32 %v631, 1.442695
      %v633 = vpow.pop %v632
      %v634 = vadd.f32 %v633, 1.0
      %v635 = vrcp.pop %v634
      %v636 = vmul.f32 1.0, %v635
      %v637 = vtanh.pop %v630
      %v638 = vmul.f32 %v636, %v568
      %640 = vrot.lane.b32.xlu0 %v637, 32
      %v641 = vpop.permute.xlu0 %640
      %v643 = vmul.f32 %v636, %v641
      %645 = vrot.lane.b32.xlu0 %v643, 32
      %v646 = vpop.permute.xlu0 %645
      %v648 = vadd.f32 %v638, %v646
      %v649 = vtanh.pop %v648
      %651 = vrot.lane.b32.xlu0 %v649, 32
      %v652 = vpop.permute.xlu0 %651
      %v654 = vmul.f32 %v636, %v652
      %656 = vrot.lane.b32.xlu0 %v654, 64
      %v657 = vpop.permute.xlu0 %656
      %s659 = scalar_lea.vmem [#allocation2], 16
      %660 = vst.msk [vmem:[%s659] sm:$0xff] %vm423, %v657
      %s661 = scalar_lea.vmem [#allocation3], 24
      %v662 = vld [vmem:[%s661] sm:$0xff]
      %v663 = vpack.c.bf16 %v654, %v654
      %665 = vrot.lane.b32.xlu0 %v663, 64
      %v666 = vpop.permute.xlu0 %665
      %v668 = vsel %vm423, %v666, 0
      %670 = vmatprep.subr.bf16.mxu0 0
      %671 = vmatpush1.bf16.msra.mxu0 %v419
      %672 = vmatprep.subr.bf16.mxu0 0
      %673 = vmatpush1.bf16.msra.mxu0 %v420
      %674 = vmatprep.subr.bf16.mxu0 0
      %675 = vmatpush1.bf16.msra.mxu0 0
      %676 = vmatprep.subr.bf16.mxu0 0
      %677 = vmatpush1.bf16.msra.mxu0 0
      %678 = vmatprep.subr.bf16.mxu0 0
      %679 = vmatpush1.bf16.msra.mxu0 0
      %680 = vmatprep.subr.bf16.mxu0 0
      %681 = vmatpush1.bf16.msra.mxu0 0
      %682 = vmatprep.subr.bf16.mxu0 0
      %683 = vmatpush1.bf16.msra.mxu0 0
      %684 = vmatprep.subr.bf16.mxu0 0
      %685 = vmatpush1.bf16.msra.mxu0 0
      %686 = vmatprep.subr.bf16.mxu0 0
      %687 = vmatpush1.bf16.msra.mxu0 0
      %688 = vmatprep.subr.bf16.mxu0 0
      %689 = vmatpush1.bf16.msra.mxu0 0
      %690 = vmatprep.subr.bf16.mxu0 0
      %691 = vmatpush1.bf16.msra.mxu0 0
      %692 = vmatprep.subr.bf16.mxu0 0
      %693 = vmatpush1.bf16.msra.mxu0 0
      %694 = vmatprep.subr.bf16.mxu0 0
      %695 = vmatpush1.bf16.msra.mxu0 0
      %696 = vmatprep.subr.bf16.mxu0 0
      %697 = vmatpush1.bf16.msra.mxu0 0
      %698 = vmatprep.subr.bf16.mxu0 0
      %699 = vmatpush1.bf16.msra.mxu0 0
      %700 = vmatprep.subr.bf16.mxu0 0
      %701 = vmatpush1.bf16.msra.mxu0 0
      %702 = vmatprep.mubr.bf16.mxu0 0
      %703 = vmatmul.mubr.bf16.gmra.mrb[0].mxu0 %v668
      %v704 = vpop.f32.mrb[0].mxu0
      %v705 = vadd.f32 0.0, %v704
      %v706 = vpop.f32.mrb[0].mxu0
      %v707 = vpop.f32.mrb[0].mxu0
      %v708 = vpop.f32.mrb[0].mxu0
      %709 = vdwg.mxu0
      %v710 = vadd.f32 %v662, %v705
      %v711 = vxor.u32 %v710, 2147483648
      %v712 = vmul.f32 %v711, 1.442695
      %v713 = vpow.pop %v712
      %v714 = vadd.f32 %v713, 1.0
      %v715 = vrcp.pop %v714
      %v716 = vmul.f32 1.0, %v715
      %v717 = vtanh.pop %v710
      %v718 = vmul.f32 %v716, %v648
      %720 = vrot.lane.b32.xlu0 %v717, 32
      %v721 = vpop.permute.xlu0 %720
      %v723 = vmul.f32 %v716, %v721
      %725 = vrot.lane.b32.xlu0 %v723, 32
      %v726 = vpop.permute.xlu0 %725
      %v728 = vadd.f32 %v718, %v726
      %v729 = vtanh.pop %v728
      %731 = vrot.lane.b32.xlu0 %v729, 32
      %v732 = vpop.permute.xlu0 %731
      %v734 = vmul.f32 %v716, %v732
      %736 = vrot.lane.b32.xlu0 %v734, 64
      %v737 = vpop.permute.xlu0 %736
      %s739 = scalar_lea.vmem [#allocation2], 24
      %740 = vst.msk [vmem:[%s739] sm:$0xff] %vm423, %v737
      %741 = vst.msk [vmem:[#allocation4] sm:$0xff] %vm423, %v737
      %743 = vrot.lane.b32.xlu0 %v728, 96
      %v744 = vpop.permute.xlu0 %743
      %746 = vst.msk [vmem:[#allocation5] sm:$0xff] %vm423, %v744
      %v747 = vld [vmem:[#allocation2] sm:$0xff]
      %v748 = vld [vmem:[#allocation2 + $0x8] sm:$0xff]
      %v749 = vld [vmem:[#allocation2 + $0x10] sm:$0xff]
      %v750 = vld [vmem:[#allocation2 + $0x18] sm:$0xff]
      %v751 = vpack.c.bf16 %v748, %v747
      %v752 = vpack.c.bf16 %v750, %v749
      %v753 = vld [vmem:[%s2] sm:$0xf]
      %v754 = vld [vmem:[%s2 + $0x4] sm:$0xf]
      %v755 = vld [vmem:[%s2 + $0x8] sm:$0xf]
      %v756 = vld [vmem:[%s2 + $0xc] sm:$0xf]
      %s757 = scalar_lea.vmem %s4, 1
      %v758 = vld [vmem:[%s757] sm:$0x1]
      %v760 = vlaneseq
      %v761 = vshrl.u32 %v760, 7
      %v762 = vsub.s32 0, %v761
      %v763 = vrot.slane %v758, %v762
      %v769 = vunpack.c.l.b16 %v753
      %v770 = vunpack.c.l.b16 %v754
      %v771 = vunpack.c.l.b16 %v755
      %v772 = vunpack.c.l.b16 %v756
      %v773 = vpack.c.b16 %v770, %v769
      %v774 = vpack.c.b16 %v772, %v771
      %v778 = vsel %vm423, %v751, 0
      %v781 = vsel %vm423, %v752, 0
      %783 = vmatprep.subr.bf16.mxu0 0
      %784 = vmatpush1.bf16.msra.mxu0 %v773
      %785 = vmatprep.subr.bf16.mxu0 0
      %786 = vmatpush1.bf16.msra.mxu0 %v774
      %787 = vmatprep.subr.bf16.mxu0 0
      %788 = vmatpush1.bf16.msra.mxu0 0
      %789 = vmatprep.subr.bf16.mxu0 0
      %790 = vmatpush1.bf16.msra.mxu0 0
      %791 = vmatprep.subr.bf16.mxu0 0
      %792 = vmatpush1.bf16.msra.mxu0 0
      %793 = vmatprep.subr.bf16.mxu0 0
      %794 = vmatpush1.bf16.msra.mxu0 0
      %795 = vmatprep.subr.bf16.mxu0 0
      %796 = vmatpush1.bf16.msra.mxu0 0
      %797 = vmatprep.subr.bf16.mxu0 0
      %798 = vmatpush1.bf16.msra.mxu0 0
      %799 = vmatprep.subr.bf16.mxu0 0
      %800 = vmatpush1.bf16.msra.mxu0 0
      %801 = vmatprep.subr.bf16.mxu0 0
      %802 = vmatpush1.bf16.msra.mxu0 0
      %803 = vmatprep.subr.bf16.mxu0 0
      %804 = vmatpush1.bf16.msra.mxu0 0
      %805 = vmatprep.subr.bf16.mxu0 0
      %806 = vmatpush1.bf16.msra.mxu0 0
      %807 = vmatprep.subr.bf16.mxu0 0
      %808 = vmatpush1.bf16.msra.mxu0 0
      %809 = vmatprep.subr.bf16.mxu0 0
      %810 = vmatpush1.bf16.msra.mxu0 0
      %811 = vmatprep.subr.bf16.mxu0 0
      %812 = vmatpush1.bf16.msra.mxu0 0
      %813 = vmatprep.subr.bf16.mxu0 0
      %814 = vmatpush1.bf16.msra.mxu0 0
      %815 = vmatprep.mubr.bf16.mxu0 0
      %816 = vmatmul.mubr.bf16.gmra.mrb[0].mxu0 %v778
      %v817 = vpop.f32.mrb[0].mxu0
      %v818 = vadd.f32 %v763, %v817
      %v819 = vpop.f32.mrb[0].mxu0
      %v820 = vpop.f32.mrb[0].mxu0
      %v821 = vadd.f32 %v763, %v820
      %v822 = vpop.f32.mrb[0].mxu0
      %823 = vmatprep.mubr.bf16.mxu0 0
      %824 = vmatmul.mubr.bf16.gmra.mrb[0].mxu0 %v781
      %v825 = vpop.f32.mrb[0].mxu0
      %v826 = vadd.f32 %v763, %v825
      %v827 = vpop.f32.mrb[0].mxu0
      %v828 = vpop.f32.mrb[0].mxu0
      %v829 = vadd.f32 %v763, %v828
      %v830 = vpop.f32.mrb[0].mxu0
      %831 = vdwg.mxu0
      %832 = vst [vmem:[#allocation3] sm:$0xff] %v818
      %833 = vst [vmem:[#allocation3 + $0x8] sm:$0xff] %v821
      %834 = vst [vmem:[#allocation3 + $0x10] sm:$0xff] %v826
      %835 = vst [vmem:[#allocation3 + $0x18] sm:$0xff] %v829
      %s836 = scalar_lea.vmem %s3, 16
      %v837 = vld [vmem:[%s836] sm:$0xf]
      %v838 = vld [vmem:[%s836 + $0x4] sm:$0xf]
      %v839 = vld [vmem:[%s836 + $0x8] sm:$0xf]
      %v840 = vld [vmem:[%s836 + $0xc] sm:$0xf]
      %s841 = scalar_lea.vmem [#allocation4], 8
      %v842 = vld [vmem:[%s841] sm:$0xff]
      %s843 = scalar_lea.vmem [#allocation5], 8
      %v844 = vld [vmem:[%s843] sm:$0xff]
      %v845 = vld [vmem:[#allocation3] sm:$0xff]
      %v846 = vpack.c.bf16 %v842, %v842
      %v851 = vunpack.c.l.b16 %v837
      %v852 = vunpack.c.l.b16 %v838
      %v853 = vunpack.c.l.b16 %v839
      %v854 = vunpack.c.l.b16 %v840
      %v855 = vpack.c.b16 %v852, %v851
      %v856 = vpack.c.b16 %v854, %v853
      %v860 = vsel %vm423, %v846, 0
      %862 = vmatprep.subr.bf16.mxu0 0
      %863 = vmatpush1.bf16.msra.mxu0 %v855
      %864 = vmatprep.subr.bf16.mxu0 0
      %865 = vmatpush1.bf16.msra.mxu0 %v856
      %866 = vmatprep.subr.bf16.mxu0 0
      %867 = vmatpush1.bf16.msra.mxu0 0
      %868 = vmatprep.subr.bf16.mxu0 0
      %869 = vmatpush1.bf16.msra.mxu0 0
      %870 = vmatprep.subr.bf16.mxu0 0
      %871 = vmatpush1.bf16.msra.mxu0 0
      %872 = vmatprep.subr.bf16.mxu0 0
      %873 = vmatpush1.bf16.msra.mxu0 0
      %874 = vmatprep.subr.bf16.mxu0 0
      %875 = vmatpush1.bf16.msra.mxu0 0
      %876 = vmatprep.subr.bf16.mxu0 0
      %877 = vmatpush1.bf16.msra.mxu0 0
      %878 = vmatprep.subr.bf16.mxu0 0
      %879 = vmatpush1.bf16.msra.mxu0 0
      %880 = vmatprep.subr.bf16.mxu0 0
      %881 = vmatpush1.bf16.msra.mxu0 0
      %882 = vmatprep.subr.bf16.mxu0 0
      %883 = vmatpush1.bf16.msra.mxu0 0
      %884 = vmatprep.subr.bf16.mxu0 0
      %885 = vmatpush1.bf16.msra.mxu0 0
      %886 = vmatprep.subr.bf16.mxu0 0
      %887 = vmatpush1.bf16.msra.mxu0 0
      %888 = vmatprep.subr.bf16.mxu0 0
      %889 = vmatpush1.bf16.msra.mxu0 0
      %890 = vmatprep.subr.bf16.mxu0 0
      %891 = vmatpush1.bf16.msra.mxu0 0
      %892 = vmatprep.subr.bf16.mxu0 0
      %893 = vmatpush1.bf16.msra.mxu0 0
      %894 = vmatprep.mubr.bf16.mxu0 0
      %895 = vmatmul.mubr.bf16.gmra.mrb[0].mxu0 %v860
      %v896 = vpop.f32.mrb[0].mxu0
      %v897 = vadd.f32 0.0, %v896
      %v898 = vpop.f32.mrb[0].mxu0
      %v899 = vpop.f32.mrb[0].mxu0
      %v900 = vpop.f32.mrb[0].mxu0
      %901 = vdwg.mxu0
      %v902 = vadd.f32 %v845, %v897
      %v903 = vxor.u32 %v902, 2147483648
      %v904 = vmul.f32 %v903, 1.442695
      %v905 = vpow.pop %v904
      %v906 = vadd.f32 %v905, 1.0
      %v907 = vrcp.pop %v906
      %v908 = vmul.f32 1.0, %v907
      %v909 = vtanh.pop %v902
      %911 = vrot.lane.b32.xlu0 %v844, 32
      %v912 = vpop.permute.xlu0 %911
      %v914 = vmul.f32 %v908, %v912
      %916 = vrot.lane.b32.xlu0 %v909, 32
      %v917 = vpop.permute.xlu0 %916
      %v919 = vmul.f32 %v908, %v917
      %921 = vrot.lane.b32.xlu0 %v919, 32
      %v922 = vpop.permute.xlu0 %921
      %v924 = vadd.f32 %v914, %v922
      %v925 = vtanh.pop %v924
      %927 = vrot.lane.b32.xlu0 %v925, 32
      %v928 = vpop.permute.xlu0 %927
      %v930 = vmul.f32 %v908, %v928
      %932 = vrot.lane.b32.xlu0 %v930, 64
      %v933 = vpop.permute.xlu0 %932
      %935 = vst.msk [vmem:[#allocation2] sm:$0xff] %vm423, %v933
      %v936 = vld [vmem:[%s501] sm:$0xff]
      %v937 = vpack.c.bf16 %v930, %v930
      %939 = vrot.lane.b32.xlu0 %v937, 64
      %v940 = vpop.permute.xlu0 %939
      %v942 = vsel %vm423, %v940, 0
      %944 = vmatprep.subr.bf16.mxu0 0
      %945 = vmatpush1.bf16.msra.mxu0 %v855
      %946 = vmatprep.subr.bf16.mxu0 0
      %947 = vmatpush1.bf16.msra.mxu0 %v856
      %948 = vmatprep.subr.bf16.mxu0 0
      %949 = vmatpush1.bf16.msra.mxu0 0
      %950 = vmatprep.subr.bf16.mxu0 0
      %951 = vmatpush1.bf16.msra.mxu0 0
      %952 = vmatprep.subr.bf16.mxu0 0
      %953 = vmatpush1.bf16.msra.mxu0 0
      %954 = vmatprep.subr.bf16.mxu0 0
      %955 = vmatpush1.bf16.msra.mxu0 0
      %956 = vmatprep.subr.bf16.mxu0 0
      %957 = vmatpush1.bf16.msra.mxu0 0
      %958 = vmatprep.subr.bf16.mxu0 0
      %959 = vmatpush1.bf16.msra.mxu0 0
      %960 = vmatprep.subr.bf16.mxu0 0
      %961 = vmatpush1.bf16.msra.mxu0 0
      %962 = vmatprep.subr.bf16.mxu0 0
      %963 = vmatpush1.bf16.msra.mxu0 0
      %964 = vmatprep.subr.bf16.mxu0 0
      %965 = vmatpush1.bf16.msra.mxu0 0
      %966 = vmatprep.subr.bf16.mxu0 0
      %967 = vmatpush1.bf16.msra.mxu0 0
      %968 = vmatprep.subr.bf16.mxu0 0
      %969 = vmatpush1.bf16.msra.mxu0 0
      %970 = vmatprep.subr.bf16.mxu0 0
      %971 = vmatpush1.bf16.msra.mxu0 0
      %972 = vmatprep.subr.bf16.mxu0 0
      %973 = vmatpush1.bf16.msra.mxu0 0
      %974 = vmatprep.subr.bf16.mxu0 0
      %975 = vmatpush1.bf16.msra.mxu0 0
      %976 = vmatprep.mubr.bf16.mxu0 0
      %977 = vmatmul.mubr.bf16.gmra.mrb[0].mxu0 %v942
      %v978 = vpop.f32.mrb[0].mxu0
      %v979 = vadd.f32 0.0, %v978
      %v980 = vpop.f32.mrb[0].mxu0
      %v981 = vpop.f32.mrb[0].mxu0
      %v982 = vpop.f32.mrb[0].mxu0
      %983 = vdwg.mxu0
      %v984 = vadd.f32 %v936, %v979
      %v985 = vxor.u32 %v984, 2147483648
      %v986 = vmul.f32 %v985, 1.442695
      %v987 = vpow.pop %v986
      %v988 = vadd.f32 %v987, 1.0
      %v989 = vrcp.pop %v988
      %v990 = vmul.f32 1.0, %v989
      %v991 = vtanh.pop %v984
      %v992 = vmul.f32 %v990, %v924
      %994 = vrot.lane.b32.xlu0 %v991, 32
      %v995 = vpop.permute.xlu0 %994
      %v997 = vmul.f32 %v990, %v995
      %999 = vrot.lane.b32.xlu0 %v997, 32
      %v1000 = vpop.permute.xlu0 %999
      %v1002 = vadd.f32 %v992, %v1000
      %v1003 = vtanh.pop %v1002
      %1005 = vrot.lane.b32.xlu0 %v1003, 32
      %v1006 = vpop.permute.xlu0 %1005
      %v1008 = vmul.f32 %v990, %v1006
      %1010 = vrot.lane.b32.xlu0 %v1008, 64
      %v1011 = vpop.permute.xlu0 %1010
      %1013 = vst.msk [vmem:[%s579] sm:$0xff] %vm423, %v1011
      %v1014 = vld [vmem:[%s581] sm:$0xff]
      %v1015 = vpack.c.bf16 %v1008, %v1008
      %1017 = vrot.lane.b32.xlu0 %v1015, 64
      %v1018 = vpop.permute.xlu0 %1017
      %v1020 = vsel %vm423, %v1018, 0
      %1022 = vmatprep.subr.bf16.mxu0 0
      %1023 = vmatpush1.bf16.msra.mxu0 %v855
      %1024 = vmatprep.subr.bf16.mxu0 0
      %1025 = vmatpush1.bf16.msra.mxu0 %v856
      %1026 = vmatprep.subr.bf16.mxu0 0
      %1027 = vmatpush1.bf16.msra.mxu0 0
      %1028 = vmatprep.subr.bf16.mxu0 0
      %1029 = vmatpush1.bf16.msra.mxu0 0
      %1030 = vmatprep.subr.bf16.mxu0 0
      %1031 = vmatpush1.bf16.msra.mxu0 0
      %1032 = vmatprep.subr.bf16.mxu0 0
      %1033 = vmatpush1.bf16.msra.mxu0 0
      %1034 = vmatprep.subr.bf16.mxu0 0
      %1035 = vmatpush1.bf16.msra.mxu0 0
      %1036 = vmatprep.subr.bf16.mxu0 0
      %1037 = vmatpush1.bf16.msra.mxu0 0
      %1038 = vmatprep.subr.bf16.mxu0 0
      %1039 = vmatpush1.bf16.msra.mxu0 0
      %1040 = vmatprep.subr.bf16.mxu0 0
      %1041 = vmatpush1.bf16.msra.mxu0 0
      %1042 = vmatprep.subr.bf16.mxu0 0
      %1043 = vmatpush1.bf16.msra.mxu0 0
      %1044 = vmatprep.subr.bf16.mxu0 0
      %1045 = vmatpush1.bf16.msra.mxu0 0
      %1046 = vmatprep.subr.bf16.mxu0 0
      %1047 = vmatpush1.bf16.msra.mxu0 0
      %1048 = vmatprep.subr.bf16.mxu0 0
      %1049 = vmatpush1.bf16.msra.mxu0 0
      %1050 = vmatprep.subr.bf16.mxu0 0
      %1051 = vmatpush1.bf16.msra.mxu0 0
      %1052 = vmatprep.subr.bf16.mxu0 0
      %1053 = vmatpush1.bf16.msra.mxu0 0
      %1054 = vmatprep.mubr.bf16.mxu0 0
      %1055 = vmatmul.mubr.bf16.gmra.mrb[0].mxu0 %v1020
      %v1056 = vpop.f32.mrb[0].mxu0
      %v1057 = vadd.f32 0.0, %v1056
      %v1058 = vpop.f32.mrb[0].mxu0
      %v1059 = vpop.f32.mrb[0].mxu0
      %v1060 = vpop.f32.mrb[0].mxu0
      %1061 = vdwg.mxu0
      %v1062 = vadd.f32 %v1014, %v1057
      %v1063 = vxor.u32 %v1062, 2147483648
      %v1064 = vmul.f32 %v1063, 1.442695
      %v1065 = vpow.pop %v1064
      %v1066 = vadd.f32 %v1065, 1.0
      %v1067 = vrcp.pop %v1066
      %v1068 = vmul.f32 1.0, %v1067
      %v1069 = vtanh.pop %v1062
      %v1070 = vmul.f32 %v1068, %v1002
      %1072 = vrot.lane.b32.xlu0 %v1069, 32
      %v1073 = vpop.permute.xlu0 %1072
      %v1075 = vmul.f32 %v1068, %v1073
      %1077 = vrot.lane.b32.xlu0 %v1075, 32
      %v1078 = vpop.permute.xlu0 %1077
      %v1080 = vadd.f32 %v1070, %v1078
      %v1081 = vtanh.pop %v1080
      %1083 = vrot.lane.b32.xlu0 %v1081, 32
      %v1084 = vpop.permute.xlu0 %1083
      %v1086 = vmul.f32 %v1068, %v1084
      %1088 = vrot.lane.b32.xlu0 %v1086, 64
      %v1089 = vpop.permute.xlu0 %1088
      %1091 = vst.msk [vmem:[%s659] sm:$0xff] %vm423, %v1089
      %v1092 = vld [vmem:[%s661] sm:$0xff]
      %v1093 = vpack.c.bf16 %v1086, %v1086
      %1095 = vrot.lane.b32.xlu0 %v1093, 64
      %v1096 = vpop.permute.xlu0 %1095
      %v1098 = vsel %vm423, %v1096, 0
      %1100 = vmatprep.subr.bf16.mxu0 0
      %1101 = vmatpush1.bf16.msra.mxu0 %v855
      %1102 = vmatprep.subr.bf16.mxu0 0
      %1103 = vmatpush1.bf16.msra.mxu0 %v856
      %1104 = vmatprep.subr.bf16.mxu0 0
      %1105 = vmatpush1.bf16.msra.mxu0 0
      %1106 = vmatprep.subr.bf16.mxu0 0
      %1107 = vmatpush1.bf16.msra.mxu0 0
      %1108 = vmatprep.subr.bf16.mxu0 0
      %1109 = vmatpush1.bf16.msra.mxu0 0
      %1110 = vmatprep.subr.bf16.mxu0 0
      %1111 = vmatpush1.bf16.msra.mxu0 0
      %1112 = vmatprep.subr.bf16.mxu0 0
      %1113 = vmatpush1.bf16.msra.mxu0 0
      %1114 = vmatprep.subr.bf16.mxu0 0
      %1115 = vmatpush1.bf16.msra.mxu0 0
      %1116 = vmatprep.subr.bf16.mxu0 0
      %1117 = vmatpush1.bf16.msra.mxu0 0
      %1118 = vmatprep.subr.bf16.mxu0 0
      %1119 = vmatpush1.bf16.msra.mxu0 0
      %1120 = vmatprep.subr.bf16.mxu0 0
      %1121 = vmatpush1.bf16.msra.mxu0 0
      %1122 = vmatprep.subr.bf16.mxu0 0
      %1123 = vmatpush1.bf16.msra.mxu0 0
      %1124 = vmatprep.subr.bf16.mxu0 0
      %1125 = vmatpush1.bf16.msra.mxu0 0
      %1126 = vmatprep.subr.bf16.mxu0 0
      %1127 = vmatpush1.bf16.msra.mxu0 0
      %1128 = vmatprep.subr.bf16.mxu0 0
      %1129 = vmatpush1.bf16.msra.mxu0 0
      %1130 = vmatprep.subr.bf16.mxu0 0
      %1131 = vmatpush1.bf16.msra.mxu0 0
      %1132 = vmatprep.mubr.bf16.mxu0 0
      %1133 = vmatmul.mubr.bf16.gmra.mrb[0].mxu0 %v1098
      %v1134 = vpop.f32.mrb[0].mxu0
      %v1135 = vadd.f32 0.0, %v1134
      %v1136 = vpop.f32.mrb[0].mxu0
      %v1137 = vpop.f32.mrb[0].mxu0
      %v1138 = vpop.f32.mrb[0].mxu0
      %1139 = vdwg.mxu0
      %v1140 = vadd.f32 %v1092, %v1135
      %v1141 = vxor.u32 %v1140, 2147483648
      %v1142 = vmul.f32 %v1141, 1.442695
      %v1143 = vpow.pop %v1142
      %v1144 = vadd.f32 %v1143, 1.0
      %v1145 = vrcp.pop %v1144
      %v1146 = vmul.f32 1.0, %v1145
      %v1147 = vtanh.pop %v1140
      %v1148 = vmul.f32 %v1146, %v1080
      %1150 = vrot.lane.b32.xlu0 %v1147, 32
      %v1151 = vpop.permute.xlu0 %1150
      %v1153 = vmul.f32 %v1146, %v1151
      %1155 = vrot.lane.b32.xlu0 %v1153, 32
      %v1156 = vpop.permute.xlu0 %1155
      %v1158 = vadd.f32 %v1148, %v1156
      %v1159 = vtanh.pop %v1158
      %1161 = vrot.lane.b32.xlu0 %v1159, 32
      %v1162 = vpop.permute.xlu0 %1161
      %v1164 = vmul.f32 %v1146, %v1162
      %1166 = vrot.lane.b32.xlu0 %v1164, 64
      %v1167 = vpop.permute.xlu0 %1166
      %1169 = vst.msk [vmem:[%s739] sm:$0xff] %vm423, %v1167
      %1170 = vst.msk [vmem:[%s841] sm:$0xff] %vm423, %v1167
      %1172 = vrot.lane.b32.xlu0 %v1158, 96
      %v1173 = vpop.permute.xlu0 %1172
      %1175 = vst.msk [vmem:[%s843] sm:$0xff] %vm423, %v1173
      %v1176 = vld [vmem:[#allocation2] sm:$0xff]
      %v1177 = vld [vmem:[#allocation2 + $0x8] sm:$0xff]
      %v1178 = vld [vmem:[#allocation2 + $0x10] sm:$0xff]
      %v1179 = vld [vmem:[#allocation2 + $0x18] sm:$0xff]
      %v1180 = vpack.c.bf16 %v1177, %v1176
      %v1181 = vpack.c.bf16 %v1179, %v1178
      %v1182 = vld [vmem:[%s5] sm:$0xf]
      %v1183 = vld [vmem:[%s5 + $0x4] sm:$0xf]
      %v1184 = vld [vmem:[%s5 + $0x8] sm:$0xf]
      %v1185 = vld [vmem:[%s5 + $0xc] sm:$0xf]
      %v1186 = vld [vmem:[%s6] sm:$0x1]
      %v1188 = vlaneseq
      %v1189 = vshrl.u32 %v1188, 7
      %v1190 = vsub.s32 0, %v1189
      %v1191 = vrot.slane %v1186, %v1190
      %v1197 = vunpack.c.l.b16 %v1182
      %v1198 = vunpack.c.l.b16 %v1183
      %v1199 = vunpack.c.l.b16 %v1184
      %v1200 = vunpack.c.l.b16 %v1185
      %v1201 = vpack.c.b16 %v1198, %v1197
      %v1202 = vpack.c.b16 %v1200, %v1199
      %v1206 = vsel %vm423, %v1180, 0
      %v1209 = vsel %vm423, %v1181, 0
      %1211 = vmatprep.subr.bf16.mxu0 0
      %1212 = vmatpush1.bf16.msra.mxu0 %v1201
      %1213 = vmatprep.subr.bf16.mxu0 0
      %1214 = vmatpush1.bf16.msra.mxu0 %v1202
      %1215 = vmatprep.subr.bf16.mxu0 0
      %1216 = vmatpush1.bf16.msra.mxu0 0
      %1217 = vmatprep.subr.bf16.mxu0 0
      %1218 = vmatpush1.bf16.msra.mxu0 0
      %1219 = vmatprep.subr.bf16.mxu0 0
      %1220 = vmatpush1.bf16.msra.mxu0 0
      %1221 = vmatprep.subr.bf16.mxu0 0
      %1222 = vmatpush1.bf16.msra.mxu0 0
      %1223 = vmatprep.subr.bf16.mxu0 0
      %1224 = vmatpush1.bf16.msra.mxu0 0
      %1225 = vmatprep.subr.bf16.mxu0 0
      %1226 = vmatpush1.bf16.msra.mxu0 0
      %1227 = vmatprep.subr.bf16.mxu0 0
      %1228 = vmatpush1.bf16.msra.mxu0 0
      %1229 = vmatprep.subr.bf16.mxu0 0
      %1230 = vmatpush1.bf16.msra.mxu0 0
      %1231 = vmatprep.subr.bf16.mxu0 0
      %1232 = vmatpush1.bf16.msra.mxu0 0
      %1233 = vmatprep.subr.bf16.mxu0 0
      %1234 = vmatpush1.bf16.msra.mxu0 0
      %1235 = vmatprep.subr.bf16.mxu0 0
      %1236 = vmatpush1.bf16.msra.mxu0 0
      %1237 = vmatprep.subr.bf16.mxu0 0
      %1238 = vmatpush1.bf16.msra.mxu0 0
      %1239 = vmatprep.subr.bf16.mxu0 0
      %1240 = vmatpush1.bf16.msra.mxu0 0
      %1241 = vmatprep.subr.bf16.mxu0 0
      %1242 = vmatpush1.bf16.msra.mxu0 0
      %1243 = vmatprep.mubr.bf16.mxu0 0
      %1244 = vmatmul.mubr.bf16.gmra.mrb[0].mxu0 %v1206
      %v1245 = vpop.f32.mrb[0].mxu0
      %v1246 = vadd.f32 %v1191, %v1245
      %v1247 = vpop.f32.mrb[0].mxu0
      %v1248 = vpop.f32.mrb[0].mxu0
      %v1249 = vadd.f32 %v1191, %v1248
      %v1250 = vpop.f32.mrb[0].mxu0
      %1251 = vmatprep.mubr.bf16.mxu0 0
      %1252 = vmatmul.mubr.bf16.gmra.mrb[0].mxu0 %v1209
      %v1253 = vpop.f32.mrb[0].mxu0
      %v1254 = vadd.f32 %v1191, %v1253
      %v1255 = vpop.f32.mrb[0].mxu0
      %v1256 = vpop.f32.mrb[0].mxu0
      %v1257 = vadd.f32 %v1191, %v1256
      %v1258 = vpop.f32.mrb[0].mxu0
      %1259 = vdwg.mxu0
      %v1260 = vld [vmem:[#allocation6] sm:$0xff]
      %v1261 = vadd.f32 %v1260, %v1246
      %1262 = vst.msk [vmem:[%s311] sm:$0xff] %vm339, %v1261
      %v1263 = vadd.f32 %v1261, %v1249
      %s1264 = scalar_lea.vmem %s311, 8
      %1265 = vst.msk [vmem:[%s1264] sm:$0xff] %vm339, %v1263
      %v1266 = vadd.f32 %v1263, %v1254
      %s1267 = scalar_lea.vmem %s311, 16
      %1268 = vst.msk [vmem:[%s1267] sm:$0xff] %vm339, %v1266
      %v1269 = vadd.f32 %v1266, %v1257
      %s1270 = scalar_lea.vmem %s311, 24
      %1271 = vst.msk [vmem:[%s1270] sm:$0xff] %vm339, %v1269
      %1272 = vst.msk [vmem:[#allocation6] sm:$0xff] %vm339, %v1269
      %s1273 = smul.u32 4, %s23
      %p1274 = scmp.lt.s32.totalorder %s1273, 7
      %s1275 = scalar_select %p1274, %s1273, 7
      %p1276 = scmp.lt.s32.totalorder %s22, 0
      %s1277 = scalar_select %p1276, %s22, 0
      %s1278 = sadd.s32 %s1277, %s1275
      %s1279 = smul.addr %s1278, 8
      %s1280 = scalar_lea.vmem %s7, %s1279
      // Predicated region
      $region53: #{mymodel_forward.1} parent=47 // pred_check
        %p1281 = pneg %p204
      $region54: #{mymodel_forward.1} parent=47 // pred_check_branch
        %1283 = sbr.rel (%p1281) target = $region56
      $region55: #{mymodel_forward.1} parent=47 // pred_region
        %s1284 = smul.u32 4, %s23
      $region56: #{mymodel_forward.1} parent=47 // pred_fallthru
        _
    $region48: #{mymodel_forward.1} parent=5 // pred_fallthru
      _
    %p1285 = scmp.le.s32.totalorder 2, %s13
    // Predicated region
    $region57: #{mymodel_forward.1} parent=5 // pred_check
      %p1286 = pneg %p1285
    $region58: #{mymodel_forward.1} parent=5 // pred_check_branch
      %1288 = sbr.rel (%p1286) target = $region60
    $region59: #{mymodel_forward.1} parent=5 // pred_region
      %s1289 = ssub.s32 %s13, 2
      // Predicated region
      $region61: #{mymodel_forward.1} parent=59 // pred_check
        %p1290 = pneg %p210
      $region62: #{mymodel_forward.1} parent=59 // pred_check_branch
        %1292 = sbr.rel (%p1290) target = $region64
      $region63: #{mymodel_forward.1} parent=59 // pred_region
        %s1293 = smul.u32 4, %s25
        %p1294 = scmp.lt.s32.totalorder %s1293, 7
        %s1295 = scalar_select %p1294, %s1293, 7
        %p1296 = scmp.lt.s32.totalorder %s24, 0
        %s1297 = scalar_select %p1296, %s24, 0
        %s1298 = sadd.s32 %s1297, %s1295
        %s1299 = smul.addr %s1298, 8
        %s1300 = scalar_lea.vmem %s7, %s1299
      $region64: #{mymodel_forward.1} parent=59 // pred_fallthru
        _
    $region60: #{mymodel_forward.1} parent=5 // pred_fallthru
      _
  $region6: #{mymodel_forward.1} parent=0 // loop_footer
    %s17 = sadd.s32 1, %s13
  $region7: #{mymodel_forward.1} parent=0 // loop_footer_branch
    %12 = sbr.rel target = $region3
  $region8: #{mymodel_forward.1} parent=0 // loop_exit
    _

</llo_original>
